<compile_context>
chip_gen: v7x
topology: tpu7x:2x2x1
jax: 0.10.0
libtpu: 0.0.40
codegen_flags: <defaults>
</compile_context>

<pallas_src>
import functools

import jax
import jax.numpy as jnp
from jax.experimental import pallas as pl
from jax.experimental.pallas import tpu as pltpu


# ----------------------------------------------------------------------------
# Pallas kernel: per-tap GEMM accumulation + BN shift + optional ReLU + mask
# ----------------------------------------------------------------------------
def _conv_bn_act_kernel(x_ref, w_ref, shift_ref, mask_ref, o_ref, *,
                        offs, cin, relu, chunks):
    """Fused KxK conv (as T per-tap GEMMs) + BN shift + optional ReLU + sparse mask.

    x_ref    : (R, Cin)      flattened padded input for one batch element (bf16)
    w_ref    : (T*Cin, Cout) scale-folded flattened conv weight (bf16)
    shift_ref: (1, Cout)     BN inference shift (f32)
    mask_ref : (M, 1)        active-site mask on the width-padded canvas (f32)
    o_ref    : (M, Cout)     output canvas (f32)
    """
    cout = o_ref.shape[-1]
    shift = shift_ref[...]
    for r0, sz in chunks:                       # static Python loop (few chunks)
        acc = jnp.zeros((sz, cout), jnp.float32)
        for t, off in enumerate(offs):          # static tap loop (9 or 4 taps)
            xt = x_ref[pl.ds(r0 + off, sz), :]          # (sz, Cin)   bf16
            wt = w_ref[pl.ds(t * cin, cin), :]          # (Cin, Cout) bf16
            acc = acc + jnp.dot(xt, wt, preferred_element_type=jnp.float32)
        y = acc + shift
        if relu:
            y = jnp.maximum(y, 0.0)
        o_ref[pl.ds(r0, sz), :] = y * mask_ref[pl.ds(r0, sz), :]


def _fused_conv(xflat, wg, shift, mflat, *, offs, relu, tm=2048):
    """Shared pallas_call wrapper.

    xflat : (N, R, Cin)  bf16 flattened padded input
    wg    : (T*Cin, Cout) bf16 scale-folded weight
    shift : BN shift, reshaped to (1, Cout) f32
    mflat : (N, M, 1)    f32 canvas mask
    returns (N, M, Cout) f32
    """
    N, R, cin = xflat.shape
    M = mflat.shape[1]
    cout = wg.shape[1]
    assert wg.shape[0] == len(offs) * cin, (wg.shape, len(offs), cin)
    shift2 = jnp.asarray(shift, jnp.float32).reshape(1, cout)
    chunks = tuple((r0, min(tm, M - r0)) for r0 in range(0, M, tm))

    kernel = functools.partial(
        _conv_bn_act_kernel,
        offs=tuple(int(o) for o in offs),
        cin=int(cin),
        relu=bool(relu),
        chunks=chunks,
    )
    return pl.pallas_call(
        kernel,
        out_shape=jax.ShapeDtypeStruct((N, M, cout), jnp.float32),
        grid=(N,),
        in_specs=[
            pl.BlockSpec((None, R, cin), lambda n: (n, 0, 0)),       # per-batch input
            pl.BlockSpec((wg.shape[0], cout), lambda n: (0, 0)),     # full weight
            pl.BlockSpec((1, cout), lambda n: (0, 0)),               # bn shift
            pl.BlockSpec((None, M, 1), lambda n: (n, 0, 0)),         # canvas mask
        ],
        out_specs=pl.BlockSpec((None, M, cout), lambda n: (n, 0, 0)),
        compiler_params=pltpu.CompilerParams(
            dimension_semantics=("parallel",),
            vmem_limit_bytes=48 * 1024 * 1024,   # within v7x's 64 MiB physical VMEM
        ),
    )(xflat.astype(jnp.bfloat16), wg.astype(jnp.bfloat16), shift2,
      mflat.astype(jnp.float32))


# ----------------------------------------------------------------------------
# Layer wrappers (plain-JAX glue: padding / space-to-depth / crop only)
# ----------------------------------------------------------------------------
def subm_conv3x3(x, wg, shift, mask, *, relu):
    """3x3 stride-1 conv (pad=1, no bias) + folded-BN shift + opt. ReLU + mask.

    x: (N, H, W, Cin) f32,  wg: (9*Cin, Cout) bf16,  mask: (N, H, W) in {0,1}
    """
    N, H, W, Cin = x.shape
    cout = wg.shape[1]
    Wp = W + 2
    # pad: 1 top, 2 bottom (1 conv pad + 1 safety row for wrap-around columns),
    # 1 left, 1 right.
    xp = jnp.pad(x.astype(jnp.bfloat16), ((0, 0), (1, 2), (1, 1), (0, 0)))
    xflat = xp.reshape(N, (H + 3) * Wp, Cin)
    mcan = jnp.pad(mask.astype(jnp.float32), ((0, 0), (0, 0), (0, 2)))
    mflat = mcan.reshape(N, H * Wp, 1)
    offs = tuple(kh * Wp + kw for kh in range(3) for kw in range(3))
    out = _fused_conv(xflat, wg, shift, mflat, offs=offs, relu=relu)
    return out.reshape(N, H, Wp, cout)[:, :, :W, :]


def sparse_conv3x3_s2(x, wg, shift, mask_out, *, relu):
    """3x3 stride-2 conv (pad=1, no bias) rewritten as a stride-1 2x2 conv over a
    space-to-depth (phase-packed) input.  wg: (16*Cin, Cout) phase-packed weight.
    mask_out: (N, Ho, Wo) output active-site mask."""
    N, H, W, Cin = x.shape
    cout = wg.shape[1]
    if H % 2:
        x = jnp.pad(x, ((0, 0), (0, 1), (0, 0), (0, 0)))
        H += 1
    if W % 2:
        x = jnp.pad(x, ((0, 0), (0, 0), (0, 1), (0, 0)))
        W += 1
    Hb, Wb = H // 2, W // 2                      # == Ho, Wo
    xs = x.astype(jnp.bfloat16).reshape(N, Hb, 2, Wb, 2, Cin)
    xs = xs.transpose(0, 1, 3, 2, 4, 5).reshape(N, Hb, Wb, 4 * Cin)
    # pad: 1 block top/left (the conv's zero padding), 1 block bottom (safety row).
    xsp = jnp.pad(xs, ((0, 0), (1, 1), (1, 0), (0, 0)))
    Wpb = Wb + 1
    xflat = xsp.reshape(N, (Hb + 2) * Wpb, 4 * Cin)

    Ho, Wo = mask_out.shape[1], mask_out.shape[2]          # == Hb, Wb
    mcan = jnp.pad(mask_out.astype(jnp.float32),
                   ((0, 0), (0, Hb - Ho), (0, Wpb - Wo)))
    mflat = mcan.reshape(N, Hb * Wpb, 1)
    offs = tuple(dkh * Wpb + dkw for dkh in range(2) for dkw in range(2))
    out = _fused_conv(xflat, wg, shift, mflat, offs=offs, relu=relu)
    return out.reshape(N, Hb, Wpb, cout)[:, :Ho, :Wo, :]


def downsample_mask(mask, stride=2):
    """Output site is active iff any input in its 3x3 (stride-2, pad-1) RF is."""
    N, H, W = mask.shape
    Ho = (H + 2 - 3) // stride + 1
    Wo = (W + 2 - 3) // stride + 1
    mp = jnp.pad(mask, ((0, 0), (1, 1), (1, 1)))
    out = jnp.zeros((N, Ho, Wo), mask.dtype)
    for kh in range(3):
        for kw in range(3):
            out = jnp.maximum(
                out,
                jax.lax.slice(
                    mp,
                    (0, kh, kw),
                    (N, kh + (Ho - 1) * stride + 1, kw + (Wo - 1) * stride + 1),
                    (1, stride, stride),
                ),
            )
    return out


# ----------------------------------------------------------------------------
# Parameter construction (synthetic, per module __init__ shapes) + offline prep
# ----------------------------------------------------------------------------
def phase_pack_weight(w):
    """(3,3,Cin,Cout) stride-2 weight -> (2*2*4*Cin, Cout) phase-packed 2x2 weight."""
    cin, cout = w.shape[2], w.shape[3]
    w2 = jnp.zeros((2, 2, 2, 2, cin, cout), w.dtype)
    for dkh in range(2):
        for phh in range(2):
            kh = 2 * dkh + phh - 1
            if not 0 <= kh <= 2:
                continue
            for dkw in range(2):
                for phw in range(2):
                    kw = 2 * dkw + phw - 1
                    if not 0 <= kw <= 2:
                        continue
                    w2 = w2.at[dkh, dkw, phh, phw].set(w[kh, kw])
    return w2.reshape(16 * cin, cout)


def make_layer_params(key, cin, cout, stride, eps=1e-3):
    kw_, kg, kb, km, kv = jax.random.split(key, 5)
    w = jax.random.normal(kw_, (3, 3, cin, cout), jnp.float32) / jnp.sqrt(9.0 * cin)
    gamma = 1.0 + 0.1 * jax.random.normal(kg, (cout,), jnp.float32)
    beta = 0.1 * jax.random.normal(kb, (cout,), jnp.float32)
    rmean = 0.1 * jax.random.normal(km, (cout,), jnp.float32)
    rvar = 1.0 + 0.1 * jax.random.uniform(kv, (cout,), jnp.float32)
    scale = gamma * jax.lax.rsqrt(rvar + eps)
    shift = beta - rmean * scale
    wf = w * scale[None, None, None, :]          # fold BN scale into the conv weight
    if stride == 2:
        wg = phase_pack_weight(wf)               # (16*Cin, Cout)
    else:
        wg = wf.reshape(9 * cin, cout)           # (9*Cin, Cout)
    return {"wg": wg.astype(jnp.bfloat16),
            "shift": shift.reshape(1, cout).astype(jnp.float32)}


# (name, cin, cout, stride, relu) following the module __init__
LAYER_DEFS = [
    ("c1a", 64, 32, 1, False),    # conv1: SubMConv(64->32) + BN        (no ReLU)
    ("c1b", 32, 32, 1, True),     #        subm block(32->32) + BN + ReLU
    ("c2a", 32, 64, 2, True),     # conv2: spconv s2 (32->64) + BN + ReLU
    ("c2b", 64, 64, 1, True),     #        subm (64->64) + BN + ReLU
    ("c3a", 64, 128, 2, True),    # conv3
    ("c3b", 128, 128, 1, True),
    ("c4a", 128, 256, 2, True),   # conv4
    ("c4b", 256, 256, 1, True),
    ("c5a", 256, 256, 2, True),   # conv5: dense Conv2d s2 + BN + ReLU
    ("c5b", 256, 256, 1, True),   #        dense Conv2d    + BN + ReLU
]


def build_params(key):
    keys = jax.random.split(key, len(LAYER_DEFS))
    return {name: make_layer_params(k, ci, co, st)
            for (name, ci, co, st, _), k in zip(LAYER_DEFS, keys)}


# ----------------------------------------------------------------------------
# Forward pass of PillarEncoderDistillation (batch_size passed statically)
# ----------------------------------------------------------------------------
@functools.partial(jax.jit, static_argnames=("nx", "ny", "batch_size"))
def pillar_encoder_forward(pillar_features, voxel_coords, params, *, nx, ny, batch_size):
    # voxel_coords: (P, 4) int32 = (batch_idx, z, y, x); spatial_shape = [ny, nx]
    C0 = pillar_features.shape[1]
    b = voxel_coords[:, 0].astype(jnp.int32)
    yc = voxel_coords[:, 2].astype(jnp.int32)
    xc = voxel_coords[:, 3].astype(jnp.int32)

    # scatter sparse pillar features into a dense NHWC canvas (glue)
    x0 = jnp.zeros((batch_size, ny, nx, C0), jnp.float32).at[b, yc, xc].set(
        pillar_features.astype(jnp.float32))
    m0 = jnp.zeros((batch_size, ny, nx), jnp.float32).at[b, yc, xc].set(1.0)

    def S1(name, x, mask, relu=True):
        p = params[name]
        return subm_conv3x3(x, p["wg"], p["shift"], mask, relu=relu)

    def S2(name, x, mask_out, relu=True):
        p = params[name]
        return sparse_conv3x3_s2(x, p["wg"], p["shift"], mask_out, relu=relu)

    # conv1 (submanifold, stride 1 -> mask m0)
    x = S1("c1a", x0, m0, relu=False)
    x1 = S1("c1b", x, m0)

    # conv2 (spconv stride 2 then subm)
    m1 = downsample_mask(m0)
    x = S2("c2a", x1, m1)
    x2 = S1("c2b", x, m1)

    # conv3
    m2 = downsample_mask(m1)
    x = S2("c3a", x2, m2)
    x3 = S1("c3b", x, m2)

    # conv4
    m3 = downsample_mask(m2)
    x = S2("c4a", x3, m3)
    x4 = S1("c4b", x, m3)

    # conv5 (dense Conv2d blocks -> no sparsity mask)
    H4, W4 = x4.shape[1], x4.shape[2]
    ones5a = jnp.ones((batch_size, (H4 + 1) // 2, (W4 + 1) // 2), jnp.float32)
    x = S2("c5a", x4, ones5a)
    x5 = S1("c5b", x, jnp.ones((batch_size, x.shape[1], x.shape[2]), jnp.float32))

    # spconv .dense() / nn.Conv2d outputs are NCHW
    to_nchw = lambda t: jnp.transpose(t, (0, 3, 1, 2))
    return to_nchw(x3), to_nchw(x4), to_nchw(x5)


# ----------------------------------------------------------------------------
# Self-check of the fused conv primitives against lax.conv (loose bf16 tolerance)
# ----------------------------------------------------------------------------
def _self_check():
    key = jax.random.PRNGKey(1)
    kx, kw, ks, km = jax.random.split(key, 4)
    N, H, W, Cin, Cout = 2, 8, 8, 32, 32
    x = jax.random.normal(kx, (N, H, W, Cin), jnp.float32)
    w = jax.random.normal(kw, (3, 3, Cin, Cout), jnp.float32) / jnp.sqrt(9.0 * Cin)
    shift = 0.1 * jax.random.normal(ks, (Cout,), jnp.float32)
    mask = (jax.random.uniform(km, (N, H, W)) > 0.5).astype(jnp.float32)

    def ref(x, w, shift, mask, stride):
        y = jax.lax.conv_general_dilated(
            x, w, (stride, stride), ((1, 1), (1, 1)),
            dimension_numbers=("NHWC", "HWIO", "NHWC"))
        y = jnp.maximum(y + shift[None, None, None, :], 0.0)
        return y * mask[..., None]

    got1 = subm_conv3x3(x, w.reshape(9 * Cin, Cout).astype(jnp.bfloat16),
                        shift.reshape(1, Cout), mask, relu=True)
    want1 = ref(x, w, shift, mask, 1)
    assert float(jnp.max(jnp.abs(got1 - want1))) < 0.2, "stride-1 conv mismatch"

    mask2 = downsample_mask(mask)
    got2 = sparse_conv3x3_s2(x, phase_pack_weight(w).astype(jnp.bfloat16),
                             shift.reshape(1, Cout), mask2, relu=True)
    want2 = ref(x, w, shift, mask2, 2)
    assert float(jnp.max(jnp.abs(got2 - want2))) < 0.2, "stride-2 conv mismatch"


# ----------------------------------------------------------------------------
if __name__ == "__main__":
    _self_check()

    key = jax.random.PRNGKey(0)
    k_params, k_feat, k_y, k_x = jax.random.split(key, 4)

    # small config: grid_size = (nx=32, ny=32, nz=1), batch 2, 48 active pillars
    nx, ny = 32, 32
    batch_size = 2
    P = 48
    pillar_features = jax.random.normal(k_feat, (P, 64), jnp.float32)
    batch_idx = jnp.concatenate(
        [jnp.zeros((P // 2,), jnp.int32), jnp.ones((P - P // 2,), jnp.int32)])
    ys = jax.random.randint(k_y, (P,), 0, ny, dtype=jnp.int32)
    xs = jax.random.randint(k_x, (P,), 0, nx, dtype=jnp.int32)
    voxel_coords = jnp.stack(
        [batch_idx, jnp.zeros((P,), jnp.int32), ys, xs], axis=1)

    params = build_params(k_params)

    x_conv3, x_conv4, x_conv5 = pillar_encoder_forward(
        pillar_features, voxel_coords, params, nx=nx, ny=ny, batch_size=batch_size)
    jax.block_until_ready((x_conv3, x_conv4, x_conv5))

    assert x_conv3.shape == (2, 128, 8, 8), x_conv3.shape
    assert x_conv4.shape == (2, 256, 4, 4), x_conv4.shape
    assert x_conv5.shape == (2, 256, 2, 2), x_conv5.shape
    assert bool(jnp.all(jnp.isfinite(x_conv3)))
    assert bool(jnp.all(jnp.isfinite(x_conv4)))
    assert bool(jnp.all(jnp.isfinite(x_conv5)))

    print("KERNEL_OK")
</pallas_src>

<mosaic_0001>
module attributes {stable_mosaic.version = 11 : i64} {
  func.func @_conv_bn_act_kernel(%arg0: i32, %arg1: memref<1x110x32xbf16, #tpu.memory_space<vmem>>, %arg2: memref<288x32xbf16, #tpu.memory_space<vmem>>, %arg3: memref<1x32xf32, #tpu.memory_space<vmem>>, %arg4: memref<1x80x1xf32, #tpu.memory_space<vmem>>, %arg5: memref<1x80x32xf32, #tpu.memory_space<vmem>>) attributes {dimension_semantics = [#tpu.dimension_semantics<parallel>], iteration_bounds = array<i64: 2>, scalar_prefetch = 0 : i64, scratch_operands = 0 : i64, tpu.core_type = #tpu.core_type<tc>, window_params = [{transform_indices = @transform_0, window_bounds = array<i64: 1, 110, 32>}, {pipeline_mode = #tpu.pipeline_mode<synchronous>, transform_indices = @transform_1, window_bounds = array<i64: 288, 32>}, {pipeline_mode = #tpu.pipeline_mode<synchronous>, transform_indices = @transform_2, window_bounds = array<i64: 1, 32>}, {transform_indices = @transform_3, window_bounds = array<i64: 1, 80, 1>}, {transform_indices = @transform_4, window_bounds = array<i64: 1, 80, 32>}]} {
    %c0 = arith.constant 0 : index
    %c0_0 = arith.constant 0 : index
    %0 = vector.load %arg3[%c0, %c0_0] : memref<1x32xf32, #tpu.memory_space<vmem>>, vector<1x32xf32>
    %cst = arith.constant 0.000000e+00 : f32
    %1 = vector.broadcast %cst : f32 to vector<80x32xf32>
    %c0_1 = arith.constant 0 : index
    %c0_2 = arith.constant 0 : index
    %c0_3 = arith.constant 0 : index
    %2 = vector.load %arg1[%c0_1, %c0_2, %c0_3] : memref<1x110x32xbf16, #tpu.memory_space<vmem>>, vector<1x80x32xbf16>
    %3 = vector.shape_cast %2 : vector<1x80x32xbf16> to vector<80x32xbf16>
    %c0_4 = arith.constant 0 : index
    %c0_5 = arith.constant 0 : index
    %4 = vector.load %arg2[%c0_4, %c0_5] : memref<288x32xbf16, #tpu.memory_space<vmem>>, vector<32x32xbf16>
    %cst_6 = arith.constant dense<0.000000e+00> : vector<80x32xf32>
    %5 = tpu.matmul %3, %4, %cst_6 {dimension_numbers = #tpu.dot_dimension_numbers<[1], [0], [0], [1], [0, 0, 1, 1], [], []>} : vector<80x32xbf16>, vector<32x32xbf16>, vector<80x32xf32> -> vector<80x32xf32>
    %6 = arith.addf %1, %5 : vector<80x32xf32>
    %c0_7 = arith.constant 0 : index
    %c1 = arith.constant 1 : index
    %c0_8 = arith.constant 0 : index
    %7 = vector.load %arg1[%c0_7, %c1, %c0_8] : memref<1x110x32xbf16, #tpu.memory_space<vmem>>, vector<1x80x32xbf16>
    %8 = vector.shape_cast %7 : vector<1x80x32xbf16> to vector<80x32xbf16>
    %c32 = arith.constant 32 : index
    %c0_9 = arith.constant 0 : index
    %9 = vector.load %arg2[%c32, %c0_9] : memref<288x32xbf16, #tpu.memory_space<vmem>>, vector<32x32xbf16>
    %cst_10 = arith.constant dense<0.000000e+00> : vector<80x32xf32>
    %10 = tpu.matmul %8, %9, %cst_10 {dimension_numbers = #tpu.dot_dimension_numbers<[1], [0], [0], [1], [0, 0, 1, 1], [], []>} : vector<80x32xbf16>, vector<32x32xbf16>, vector<80x32xf32> -> vector<80x32xf32>
    %11 = arith.addf %6, %10 : vector<80x32xf32>
    %c0_11 = arith.constant 0 : index
    %c2 = arith.constant 2 : index
    %c0_12 = arith.constant 0 : index
    %12 = vector.load %arg1[%c0_11, %c2, %c0_12] : memref<1x110x32xbf16, #tpu.memory_space<vmem>>, vector<1x80x32xbf16>
    %13 = vector.shape_cast %12 : vector<1x80x32xbf16> to vector<80x32xbf16>
    %c64 = arith.constant 64 : index
    %c0_13 = arith.constant 0 : index
    %14 = vector.load %arg2[%c64, %c0_13] : memref<288x32xbf16, #tpu.memory_space<vmem>>, vector<32x32xbf16>
    %cst_14 = arith.constant dense<0.000000e+00> : vector<80x32xf32>
    %15 = tpu.matmul %13, %14, %cst_14 {dimension_numbers = #tpu.dot_dimension_numbers<[1], [0], [0], [1], [0, 0, 1, 1], [], []>} : vector<80x32xbf16>, vector<32x32xbf16>, vector<80x32xf32> -> vector<80x32xf32>
    %16 = arith.addf %11, %15 : vector<80x32xf32>
    %c0_15 = arith.constant 0 : index
    %c10 = arith.constant 10 : index
    %c0_16 = arith.constant 0 : index
    %17 = vector.load %arg1[%c0_15, %c10, %c0_16] : memref<1x110x32xbf16, #tpu.memory_space<vmem>>, vector<1x80x32xbf16>
    %18 = vector.shape_cast %17 : vector<1x80x32xbf16> to vector<80x32xbf16>
    %c96 = arith.constant 96 : index
    %c0_17 = arith.constant 0 : index
    %19 = vector.load %arg2[%c96, %c0_17] : memref<288x32xbf16, #tpu.memory_space<vmem>>, vector<32x32xbf16>
    %cst_18 = arith.constant dense<0.000000e+00> : vector<80x32xf32>
    %20 = tpu.matmul %18, %19, %cst_18 {dimension_numbers = #tpu.dot_dimension_numbers<[1], [0], [0], [1], [0, 0, 1, 1], [], []>} : vector<80x32xbf16>, vector<32x32xbf16>, vector<80x32xf32> -> vector<80x32xf32>
    %21 = arith.addf %16, %20 : vector<80x32xf32>
    %c0_19 = arith.constant 0 : index
    %c11 = arith.constant 11 : index
    %c0_20 = arith.constant 0 : index
    %22 = vector.load %arg1[%c0_19, %c11, %c0_20] : memref<1x110x32xbf16, #tpu.memory_space<vmem>>, vector<1x80x32xbf16>
    %23 = vector.shape_cast %22 : vector<1x80x32xbf16> to vector<80x32xbf16>
    %c128 = arith.constant 128 : index
    %c0_21 = arith.constant 0 : index
    %24 = vector.load %arg2[%c128, %c0_21] : memref<288x32xbf16, #tpu.memory_space<vmem>>, vector<32x32xbf16>
    %cst_22 = arith.constant dense<0.000000e+00> : vector<80x32xf32>
    %25 = tpu.matmul %23, %24, %cst_22 {dimension_numbers = #tpu.dot_dimension_numbers<[1], [0], [0], [1], [0, 0, 1, 1], [], []>} : vector<80x32xbf16>, vector<32x32xbf16>, vector<80x32xf32> -> vector<80x32xf32>
    %26 = arith.addf %21, %25 : vector<80x32xf32>
    %c0_23 = arith.constant 0 : index
    %c12 = arith.constant 12 : index
    %c0_24 = arith.constant 0 : index
    %27 = vector.load %arg1[%c0_23, %c12, %c0_24] : memref<1x110x32xbf16, #tpu.memory_space<vmem>>, vector<1x80x32xbf16>
    %28 = vector.shape_cast %27 : vector<1x80x32xbf16> to vector<80x32xbf16>
    %c160 = arith.constant 160 : index
    %c0_25 = arith.constant 0 : index
    %29 = vector.load %arg2[%c160, %c0_25] : memref<288x32xbf16, #tpu.memory_space<vmem>>, vector<32x32xbf16>
    %cst_26 = arith.constant dense<0.000000e+00> : vector<80x32xf32>
    %30 = tpu.matmul %28, %29, %cst_26 {dimension_numbers = #tpu.dot_dimension_numbers<[1], [0], [0], [1], [0, 0, 1, 1], [], []>} : vector<80x32xbf16>, vector<32x32xbf16>, vector<80x32xf32> -> vector<80x32xf32>
    %31 = arith.addf %26, %30 : vector<80x32xf32>
    %c0_27 = arith.constant 0 : index
    %c20 = arith.constant 20 : index
    %c0_28 = arith.constant 0 : index
    %32 = vector.load %arg1[%c0_27, %c20, %c0_28] : memref<1x110x32xbf16, #tpu.memory_space<vmem>>, vector<1x80x32xbf16>
    %33 = vector.shape_cast %32 : vector<1x80x32xbf16> to vector<80x32xbf16>
    %c192 = arith.constant 192 : index
    %c0_29 = arith.constant 0 : index
    %34 = vector.load %arg2[%c192, %c0_29] : memref<288x32xbf16, #tpu.memory_space<vmem>>, vector<32x32xbf16>
    %cst_30 = arith.constant dense<0.000000e+00> : vector<80x32xf32>
    %35 = tpu.matmul %33, %34, %cst_30 {dimension_numbers = #tpu.dot_dimension_numbers<[1], [0], [0], [1], [0, 0, 1, 1], [], []>} : vector<80x32xbf16>, vector<32x32xbf16>, vector<80x32xf32> -> vector<80x32xf32>
    %36 = arith.addf %31, %35 : vector<80x32xf32>
    %c0_31 = arith.constant 0 : index
    %c21 = arith.constant 21 : index
    %c0_32 = arith.constant 0 : index
    %37 = vector.load %arg1[%c0_31, %c21, %c0_32] : memref<1x110x32xbf16, #tpu.memory_space<vmem>>, vector<1x80x32xbf16>
    %38 = vector.shape_cast %37 : vector<1x80x32xbf16> to vector<80x32xbf16>
    %c224 = arith.constant 224 : index
    %c0_33 = arith.constant 0 : index
    %39 = vector.load %arg2[%c224, %c0_33] : memref<288x32xbf16, #tpu.memory_space<vmem>>, vector<32x32xbf16>
    %cst_34 = arith.constant dense<0.000000e+00> : vector<80x32xf32>
    %40 = tpu.matmul %38, %39, %cst_34 {dimension_numbers = #tpu.dot_dimension_numbers<[1], [0], [0], [1], [0, 0, 1, 1], [], []>} : vector<80x32xbf16>, vector<32x32xbf16>, vector<80x32xf32> -> vector<80x32xf32>
    %41 = arith.addf %36, %40 : vector<80x32xf32>
    %c0_35 = arith.constant 0 : index
    %c22 = arith.constant 22 : index
    %c0_36 = arith.constant 0 : index
    %42 = vector.load %arg1[%c0_35, %c22, %c0_36] : memref<1x110x32xbf16, #tpu.memory_space<vmem>>, vector<1x80x32xbf16>
    %43 = vector.shape_cast %42 : vector<1x80x32xbf16> to vector<80x32xbf16>
    %c256 = arith.constant 256 : index
    %c0_37 = arith.constant 0 : index
    %44 = vector.load %arg2[%c256, %c0_37] : memref<288x32xbf16, #tpu.memory_space<vmem>>, vector<32x32xbf16>
    %cst_38 = arith.constant dense<0.000000e+00> : vector<80x32xf32>
    %45 = tpu.matmul %43, %44, %cst_38 {dimension_numbers = #tpu.dot_dimension_numbers<[1], [0], [0], [1], [0, 0, 1, 1], [], []>} : vector<80x32xbf16>, vector<32x32xbf16>, vector<80x32xf32> -> vector<80x32xf32>
    %46 = arith.addf %41, %45 : vector<80x32xf32>
    %47 = vector.broadcast %0 : vector<1x32xf32> to vector<80x32xf32>
    %48 = arith.addf %46, %47 : vector<80x32xf32>
    %cst_39 = arith.constant 0.000000e+00 : f32
    %49 = vector.broadcast %cst_39 : f32 to vector<80x32xf32>
    %50 = arith.maximumf %48, %49 : vector<80x32xf32>
    %c0_40 = arith.constant 0 : index
    %c0_41 = arith.constant 0 : index
    %c0_42 = arith.constant 0 : index
    %51 = vector.load %arg4[%c0_40, %c0_41, %c0_42] : memref<1x80x1xf32, #tpu.memory_space<vmem>>, vector<1x80x1xf32>
    %52 = vector.shape_cast %51 : vector<1x80x1xf32> to vector<80x1xf32>
    %53 = vector.broadcast %52 : vector<80x1xf32> to vector<80x32xf32>
    %54 = arith.mulf %50, %53 : vector<80x32xf32>
    %c0_43 = arith.constant 0 : index
    %c0_44 = arith.constant 0 : index
    %c0_45 = arith.constant 0 : index
    %55 = vector.load %arg5[%c0_43, %c0_44, %c0_45] : memref<1x80x32xf32, #tpu.memory_space<vmem>>, vector<1x80x32xf32>
    %56 = vector.shape_cast %55 : vector<1x80x32xf32> to vector<80x32xf32>
    %57 = vector.shape_cast %54 : vector<80x32xf32> to vector<1x80x32xf32>
    tpu.vector_store %arg5[%c0_43, %c0_44, %c0_45], %57 {strides = array<i32>} : memref<1x80x32xf32, #tpu.memory_space<vmem>>, vector<1x80x32xf32>,
    return
  }
  func.func @transform_0(%arg0: i32) -> (i32, i32, i32) {
    %c0_i32 = arith.constant 0 : i32
    %c0_i32_0 = arith.constant 0 : i32
    %c0_i32_1 = arith.constant 0 : i32
    return %arg0, %c0_i32, %c0_i32_0 : i32, i32, i32
  }
  func.func @transform_1(%arg0: i32) -> (i32, i32) {
    %c0_i32 = arith.constant 0 : i32
    %c0_i32_0 = arith.constant 0 : i32
    %c0_i32_1 = arith.constant 0 : i32
    return %c0_i32, %c0_i32_0 : i32, i32
  }
  func.func @transform_2(%arg0: i32) -> (i32, i32) {
    %c0_i32 = arith.constant 0 : i32
    %c0_i32_0 = arith.constant 0 : i32
    %c0_i32_1 = arith.constant 0 : i32
    return %c0_i32, %c0_i32_0 : i32, i32
  }
  func.func @transform_3(%arg0: i32) -> (i32, i32, i32) {
    %c0_i32 = arith.constant 0 : i32
    %c0_i32_0 = arith.constant 0 : i32
    %c0_i32_1 = arith.constant 0 : i32
    return %arg0, %c0_i32, %c0_i32_0 : i32, i32, i32
  }
  func.func @transform_4(%arg0: i32) -> (i32, i32, i32) {
    %c0_i32 = arith.constant 0 : i32
    %c0_i32_0 = arith.constant 0 : i32
    %c0_i32_1 = arith.constant 0 : i32
    return %arg0, %c0_i32, %c0_i32_0 : i32, i32, i32
  }
}

</mosaic_0001>

<llo_original>
// kernel: tpu_custom_call.1
$region0: #{tpu_custom_call.1}
  #allocation0 [shape = 'u32[]', space=smem, size = 0x4, offset = 0x4, fixed_abs, tag = 'smem constant byte address 0x4 - core index']
  #allocation1 [shape = 'u32[144,128]{1,0:T(1,128)}', space=vmem, size = 0x12000, scoped, tag = 'internal scratch']
  %s0 = inlined_call_operand.vmem [shape: bf16[2,110,32], index: 0, kind: input, shape index: {}]
  %s1 = inlined_call_operand.vmem [shape: bf16[288,32], index: 1, kind: input, shape index: {}]
  %s2 = inlined_call_operand.vmem [shape: f32[1,32], index: 2, kind: input, shape index: {}]
  %s3 = inlined_call_operand.vmem [shape: f32[2,80,1], index: 3, kind: input, shape index: {}]
  %s4 = inlined_call_operand.vmem [shape: f32[2,80,32], index: 4, kind: output, shape index: {}]
  %s5 = sld [smem:[#allocation0]]
  $region49: #{tpu_custom_call.1} parent=0
    _
  %s7 = ssub.s32 1, %s5
  %s8 = scalar_select 0, %s7, %s5
  loop: start=0, step=1, limit=4
  $region2: #{tpu_custom_call.1} parent=0 // loop_pre_header
    _
  $region3: #{tpu_custom_call.1} parent=0 // loop_header
    %s10 = sphi 0, %s14
    %p11 = scmp.ge.s32.totalorder %s10, 4
    %s20 = sphi 0, %s22
    %s23 = sphi 0, %s20
    %s24 = sphi 0, %s23
    %s40 = sphi 0, %s24
    %s44 = sphi 0, %s44
    %s46 = sphi 0, %s44
    %s47 = sphi 0, %s46
    %s61 = sphi 0, %s47
    %s65 = sphi 0, %s65
    %s67 = sphi 0, %s65
    %s68 = sphi 0, %s67
    %s82 = sphi 0, %s68
    %s88 = sphi 0, %s90
    %s91 = sphi 0, %s88
    %s92 = sphi 0, %s91
    %s108 = sphi 0, %s92
    %s114 = sphi 0, %s116
    %s117 = sphi 0, %s114
    %s118 = sphi 0, %s117
    %s134 = sphi 0, %s118
  $region4: #{tpu_custom_call.1} parent=0 // loop_header_branch
    %13 = sbr.rel (%p11) target = $region8
  $region5: #{tpu_custom_call.1} parent=0 // loop_body
    %s15 = ssub.s32 %s10, 1
    %s16 = ssub.s32 %s10, 2
    %s17 = sadd.s32 %s10, 1
    %s18 = ssub.s32 %s10, %s17
    %p19 = scmp.eq.s32.totalorder %s18, 0
    %s21 = sadd.s32 %s20, 1
    %s22 = scalar_select %p19, %s20, %s21
    %p25 = pneg %p19
    %p26 = scmp.eq.s32.totalorder %s10, 1
    %p27 = por %p25, %p26
    %p28 = scmp.ne.s32.totalorder %s20, %s23
    %p29 = scmp.eq.s32.totalorder %s10, 0
    %p30 = por %p28, %p29
    %p31 = scmp.ne.s32.totalorder %s20, %s23
    %p32 = scmp.eq.s32.totalorder %s15, 1
    %p33 = por %p31, %p32
    %p34 = scmp.ne.s32.totalorder %s23, %s24
    %p35 = scmp.eq.s32.totalorder %s15, 0
    %p36 = por %p34, %p35
    %p37 = scmp.ne.s32.totalorder %s23, %s24
    %p38 = scmp.eq.s32.totalorder %s16, 1
    %p39 = por %p37, %p38
    %p41 = scmp.ne.s32.totalorder %s24, %s40
    %p42 = scmp.eq.s32.totalorder %s16, 0
    %p43 = por %p41, %p42
    %s45 = sadd.s32 %s44, 1
    %p48 = scmp.eq.s32.totalorder %s10, 1
    %p49 = scmp.ne.s32.totalorder %s44, %s46
    %p50 = scmp.eq.s32.totalorder %s10, 0
    %p51 = por %p49, %p50
    %p52 = scmp.ne.s32.totalorder %s44, %s46
    %p53 = scmp.eq.s32.totalorder %s15, 1
    %p54 = por %p52, %p53
    %p55 = scmp.ne.s32.totalorder %s46, %s47
    %p56 = scmp.eq.s32.totalorder %s15, 0
    %p57 = por %p55, %p56
    %p58 = scmp.ne.s32.totalorder %s46, %s47
    %p59 = scmp.eq.s32.totalorder %s16, 1
    %p60 = por %p58, %p59
    %p62 = scmp.ne.s32.totalorder %s47, %s61
    %p63 = scmp.eq.s32.totalorder %s16, 0
    %p64 = por %p62, %p63
    %s66 = sadd.s32 %s65, 1
    %p69 = scmp.eq.s32.totalorder %s10, 1
    %p70 = scmp.ne.s32.totalorder %s65, %s67
    %p71 = scmp.eq.s32.totalorder %s10, 0
    %p72 = por %p70, %p71
    %p73 = scmp.ne.s32.totalorder %s65, %s67
    %p74 = scmp.eq.s32.totalorder %s15, 1
    %p75 = por %p73, %p74
    %p76 = scmp.ne.s32.totalorder %s67, %s68
    %p77 = scmp.eq.s32.totalorder %s15, 0
    %p78 = por %p76, %p77
    %p79 = scmp.ne.s32.totalorder %s67, %s68
    %p80 = scmp.eq.s32.totalorder %s16, 1
    %p81 = por %p79, %p80
    %p83 = scmp.ne.s32.totalorder %s68, %s82
    %p84 = scmp.eq.s32.totalorder %s16, 0
    %p85 = por %p83, %p84
    %s86 = ssub.s32 %s10, %s17
    %p87 = scmp.eq.s32.totalorder %s86, 0
    %s89 = sadd.s32 %s88, 1
    %s90 = scalar_select %p87, %s88, %s89
    %p93 = pneg %p87
    %p94 = scmp.eq.s32.totalorder %s10, 1
    %p95 = por %p93, %p94
    %p96 = scmp.ne.s32.totalorder %s88, %s91
    %p97 = scmp.eq.s32.totalorder %s10, 0
    %p98 = por %p96, %p97
    %p99 = scmp.ne.s32.totalorder %s88, %s91
    %p100 = scmp.eq.s32.totalorder %s15, 1
    %p101 = por %p99, %p100
    %p102 = scmp.ne.s32.totalorder %s91, %s92
    %p103 = scmp.eq.s32.totalorder %s15, 0
    %p104 = por %p102, %p103
    %p105 = scmp.ne.s32.totalorder %s91, %s92
    %p106 = scmp.eq.s32.totalorder %s16, 1
    %p107 = por %p105, %p106
    %p109 = scmp.ne.s32.totalorder %s92, %s108
    %p110 = scmp.eq.s32.totalorder %s16, 0
    %p111 = por %p109, %p110
    %s112 = ssub.s32 %s10, %s17
    %p113 = scmp.eq.s32.totalorder %s112, 0
    %s115 = sadd.s32 %s114, 1
    %s116 = scalar_select %p113, %s114, %s115
    %p119 = pneg %p113
    %p120 = scmp.eq.s32.totalorder %s10, 1
    %p121 = por %p119, %p120
    %p122 = scmp.ne.s32.totalorder %s114, %s117
    %p123 = scmp.eq.s32.totalorder %s10, 0
    %p124 = por %p122, %p123
    %p125 = scmp.ne.s32.totalorder %s114, %s117
    %p126 = scmp.eq.s32.totalorder %s15, 1
    %p127 = por %p125, %p126
    %p128 = scmp.ne.s32.totalorder %s117, %s118
    %p129 = scmp.eq.s32.totalorder %s15, 0
    %p130 = por %p128, %p129
    %p131 = scmp.ne.s32.totalorder %s117, %s118
    %p132 = scmp.eq.s32.totalorder %s16, 1
    %p133 = por %p131, %p132
    %p135 = scmp.ne.s32.totalorder %s118, %s134
    %p136 = scmp.eq.s32.totalorder %s16, 0
    %p137 = por %p135, %p136
    %p138 = scmp.le.s32.totalorder 1, %s10
    %p139 = scmp.lt.s32.totalorder %s10, 3
    %p140 = pnand %p138, %p139
    %p141 = pneg %p140
    // Predicated region
    $region9: #{tpu_custom_call.1} parent=5 // pred_check
      _
    $region10: #{tpu_custom_call.1} parent=5 // pred_check_branch
      %143 = sbr.rel (%p140) target = $region12
    $region11: #{tpu_custom_call.1} parent=5 // pred_region
      %s144 = ssub.s32 %s10, 1
      // Predicated region
      $region13: #{tpu_custom_call.1} parent=11 // pred_check
        %p145 = pneg %p57
      $region14: #{tpu_custom_call.1} parent=11 // pred_check_branch
        %147 = sbr.rel (%p145) target = $region16
      $region15: #{tpu_custom_call.1} parent=11 // pred_region
        _
      $region16: #{tpu_custom_call.1} parent=11 // pred_fallthru
        _
      // Predicated region
      $region17: #{tpu_custom_call.1} parent=11 // pred_check
        %p148 = pneg %p78
      $region18: #{tpu_custom_call.1} parent=11 // pred_check_branch
        %150 = sbr.rel (%p148) target = $region20
      $region19: #{tpu_custom_call.1} parent=11 // pred_region
        _
      $region20: #{tpu_custom_call.1} parent=11 // pred_fallthru
        _
    $region12: #{tpu_custom_call.1} parent=5 // pred_fallthru
      _
    %p151 = scmp.lt.s32.totalorder %s10, 2
    // Predicated region
    $region21: #{tpu_custom_call.1} parent=5 // pred_check
      %p152 = pneg %p151
    $region22: #{tpu_custom_call.1} parent=5 // pred_check_branch
      %154 = sbr.rel (%p152) target = $region24
    $region23: #{tpu_custom_call.1} parent=5 // pred_region
      // Predicated region
      $region25: #{tpu_custom_call.1} parent=23 // pred_check
        %p155 = pneg %p30
      $region26: #{tpu_custom_call.1} parent=23 // pred_check_branch
        %157 = sbr.rel (%p155) target = $region28
      $region27: #{tpu_custom_call.1} parent=23 // pred_region
        %p158 = scmp.lt.s32.totalorder %s10, 1
        %s159 = scalar_select %p158, %s10, 1
        %s160 = smul.addr %s159, 14
        %s161 = smul.addr %s160, 4
        %s162 = scalar_lea.vmem %s0, %s161
      $region28: #{tpu_custom_call.1} parent=23 // pred_fallthru
        _
      // Predicated region
      $region29: #{tpu_custom_call.1} parent=23 // pred_check
        %p163 = pneg %p98
      $region30: #{tpu_custom_call.1} parent=23 // pred_check_branch
        %165 = sbr.rel (%p163) target = $region32
      $region31: #{tpu_custom_call.1} parent=23 // pred_region
        %p166 = scmp.lt.s32.totalorder %s10, 1
        %s167 = scalar_select %p166, %s10, 1
        %s168 = smul.addr %s167, 10
        %s169 = smul.addr %s168, 8
        %s170 = scalar_lea.vmem %s3, %s169
      $region32: #{tpu_custom_call.1} parent=23 // pred_fallthru
        _
    $region24: #{tpu_custom_call.1} parent=5 // pred_fallthru
      _
    %p171 = scmp.le.s32.totalorder 1, %s10
    %p172 = scmp.lt.s32.totalorder %s10, 3
    %p173 = pnand %p171, %p172
    %p174 = pneg %p173
    // Predicated region
    $region33: #{tpu_custom_call.1} parent=5 // pred_check
      _
    $region34: #{tpu_custom_call.1} parent=5 // pred_check_branch
      %176 = sbr.rel (%p173) target = $region36
    $region35: #{tpu_custom_call.1} parent=5 // pred_region
      %s177 = ssub.s32 %s10, 1
      %p178 = scmp.lt.s32.totalorder %s15, 1
      %s179 = scalar_select %p178, %s15, 1
      %s180 = smul.addr %s179, 14
      %s181 = smul.addr %s180, 4
      %s182 = scalar_lea.vmem %s0, %s181
      %p183 = pneg %p36
      %p184 = pneg %p33
      %p185 = pneg %p57
      %p186 = pneg %p54
      %p187 = pneg %p78
      %p188 = pneg %p75
      %p189 = scmp.lt.s32.totalorder %s15, 1
      %s190 = scalar_select %p189, %s15, 1
      %s191 = smul.addr %s190, 10
      %s192 = smul.addr %s191, 8
      %s193 = scalar_lea.vmem %s3, %s192
      %p194 = pneg %p104
      %p195 = pneg %p101
      %p196 = pneg %p130
      %p197 = pneg %p127
      %p198 = scmp.lt.s32.totalorder %s15, 1
      %s199 = scalar_select %p198, %s15, 1
      %s200 = smul.addr %s199, 10
      %s201 = smul.addr %s200, 8
      %s202 = scalar_lea.vmem %s4, %s201
      %p203 = scmp.lt.s32.totalorder %s15, 1
      %s204 = scalar_select %p203, %s15, 1
      %s205 = smul.addr %s204, 14
      %s206 = smul.addr %s205, 4
      %s207 = scalar_lea.vmem %s0, %s206
      %p208 = scmp.lt.s32.totalorder %s15, 1
      %s209 = scalar_select %p208, %s15, 1
      %s210 = smul.addr %s209, 10
      %s211 = smul.addr %s210, 8
      %s212 = scalar_lea.vmem %s3, %s211
      %p213 = scmp.lt.s32.totalorder %s15, 1
      %s214 = scalar_select %p213, %s15, 1
      %s215 = smul.addr %s214, 10
      %s216 = smul.addr %s215, 8
      %s217 = scalar_lea.vmem %s4, %s216
      %v219 = vld [vmem:[%s2] sm:$0x1]
      %v220 = vld [vmem:[%s207] sm:$0xf]
      %v221 = vld [vmem:[%s207 + $0x4] sm:$0xf]
      %v222 = vld [vmem:[%s207 + $0x8] sm:$0xf]
      %v223 = vld [vmem:[%s207 + $0xc] sm:$0xf]
      %v224 = vld [vmem:[%s207 + $0x10] sm:$0xf]
      %v225 = vld [vmem:[%s207 + $0x14] sm:$0xf]
      %v226 = vld [vmem:[%s207 + $0x18] sm:$0xf]
      %v227 = vld [vmem:[%s207 + $0x1c] sm:$0xf]
      %v228 = vld [vmem:[%s207 + $0x20] sm:$0xf]
      %v229 = vld [vmem:[%s207 + $0x24] sm:$0xf]
      %v230 = vld [vmem:[%s1] sm:$0xf]
      %v231 = vld [vmem:[%s1 + $0x4] sm:$0xf]
      %v232 = vld [vmem:[%s1 + $0x8] sm:$0xf]
      %v233 = vld [vmem:[%s1 + $0xc] sm:$0xf]
      %v234 = vld [vmem:[%s207 + $0x28] sm:$0x1]
      %v235 = vld [vmem:[%s1 + $0x10] sm:$0xf]
      %v236 = vld [vmem:[%s1 + $0x14] sm:$0xf]
      %v237 = vld [vmem:[%s1 + $0x18] sm:$0xf]
      %v238 = vld [vmem:[%s1 + $0x1c] sm:$0xf]
      %v250 = vunpack.c.l.b16 %v220
      %v251 = vunpack.c.l.b16 %v221
      %v252 = vunpack.c.l.b16 %v222
      %v253 = vunpack.c.l.b16 %v223
      %v254 = vunpack.c.l.b16 %v224
      %v255 = vunpack.c.l.b16 %v225
      %v256 = vunpack.c.l.b16 %v226
      %v257 = vunpack.c.l.b16 %v227
      %v258 = vunpack.c.l.b16 %v228
      %v259 = vunpack.c.l.b16 %v229
      %v260 = vunpack.c.l.b16 %v234
      %v261 = vpack.c.b16 %v251, %v250
      %v262 = vpack.c.b16 %v253, %v252
      %v263 = vpack.c.b16 %v255, %v254
      %v264 = vpack.c.b16 %v257, %v256
      %v265 = vpack.c.b16 %v259, %v258
      %v266 = vpack.c.b16 %v260, %v260
      %vm267 = vsmask.f32 7424
      %v269 = vshrl.u32 %v261, 16
      %v271 = vshll.u32 %v261, 16
      %v273 = vrot.slane %v271, 1
      %v274 = vor.u32 %v269, %v273
      %v276 = vshll.u32 %v262, 16
      %v278 = vrot.slane %v276, 1
      %v279 = vsel %vm267, %v274, %v278
      %v280 = vshrl.u32 %v262, 16
      %v282 = vor.u32 %v280, %v278
      %v284 = vshll.u32 %v263, 16
      %v286 = vrot.slane %v284, 1
      %v287 = vsel %vm267, %v282, %v286
      %v288 = vshrl.u32 %v263, 16
      %v290 = vor.u32 %v288, %v286
      %v292 = vshll.u32 %v264, 16
      %v294 = vrot.slane %v292, 1
      %v295 = vsel %vm267, %v290, %v294
      %v296 = vshrl.u32 %v264, 16
      %v298 = vor.u32 %v296, %v294
      %v300 = vshll.u32 %v265, 16
      %v302 = vrot.slane %v300, 1
      %v303 = vsel %vm267, %v298, %v302
      %v304 = vshrl.u32 %v265, 16
      %v306 = vor.u32 %v304, %v302
      %v308 = vshll.u32 %v266, 16
      %v310 = vrot.slane %v308, 1
      %v311 = vsel %vm267, %v306, %v310
      %v316 = vunpack.c.l.b16 %v235
      %v317 = vunpack.c.l.b16 %v236
      %v318 = vunpack.c.l.b16 %v237
      %v319 = vunpack.c.l.b16 %v238
      %v320 = vpack.c.b16 %v317, %v316
      %v321 = vpack.c.b16 %v319, %v318
      %vm324 = vcmask 261120
      %v326 = vsel %vm324, %v279, 0
      %v329 = vsel %vm324, %v287, 0
      %v332 = vsel %vm324, %v295, 0
      %v335 = vsel %vm324, %v303, 0
      %v338 = vsel %vm324, %v311, 0
      %340 = vmatprep.subr.bf16.mxu0 0
      %341 = vmatpush1.bf16.msra.mxu0 %v320
      %342 = vmatprep.subr.bf16.mxu0 0
      %343 = vmatpush1.bf16.msra.mxu0 %v321
      %344 = vmatprep.subr.bf16.mxu0 0
      %345 = vmatpush1.bf16.msra.mxu0 0
      %346 = vmatprep.subr.bf16.mxu0 0
      %347 = vmatpush1.bf16.msra.mxu0 0
      %348 = vmatprep.subr.bf16.mxu0 0
      %349 = vmatpush1.bf16.msra.mxu0 0
      %350 = vmatprep.subr.bf16.mxu0 0
      %351 = vmatpush1.bf16.msra.mxu0 0
      %352 = vmatprep.subr.bf16.mxu0 0
      %353 = vmatpush1.bf16.msra.mxu0 0
      %354 = vmatprep.subr.bf16.mxu0 0
      %355 = vmatpush1.bf16.msra.mxu0 0
      %356 = vmatprep.subr.bf16.mxu0 0
      %357 = vmatpush1.bf16.msra.mxu0 0
      %358 = vmatprep.subr.bf16.mxu0 0
      %359 = vmatpush1.bf16.msra.mxu0 0
      %360 = vmatprep.subr.bf16.mxu0 0
      %361 = vmatpush1.bf16.msra.mxu0 0
      %362 = vmatprep.subr.bf16.mxu0 0
      %363 = vmatpush1.bf16.msra.mxu0 0
      %364 = vmatprep.subr.bf16.mxu0 0
      %365 = vmatpush1.bf16.msra.mxu0 0
      %366 = vmatprep.subr.bf16.mxu0 0
      %367 = vmatpush1.bf16.msra.mxu0 0
      %368 = vmatprep.subr.bf16.mxu0 0
      %369 = vmatpush1.bf16.msra.mxu0 0
      %370 = vmatprep.subr.bf16.mxu0 0
      %371 = vmatpush1.bf16.msra.mxu0 0
      %372 = vmatprep.mubr.bf16.mxu0 0
      %373 = vmatmul.mubr.bf16.gmra.mrb[0].mxu0 %v326
      %v374 = vpop.f32.mrb[0].mxu0
      %v375 = vadd.f32 0.0, %v374
      %v376 = vpop.f32.mrb[0].mxu0
      %v377 = vpop.f32.mrb[0].mxu0
      %v378 = vadd.f32 0.0, %v377
      %v379 = vpop.f32.mrb[0].mxu0
      %380 = vmatprep.mubr.bf16.mxu0 0
      %381 = vmatmul.mubr.bf16.gmra.mrb[0].mxu0 %v329
      %v382 = vpop.f32.mrb[0].mxu0
      %v383 = vadd.f32 0.0, %v382
      %v384 = vpop.f32.mrb[0].mxu0
      %v385 = vpop.f32.mrb[0].mxu0
      %v386 = vadd.f32 0.0, %v385
      %v387 = vpop.f32.mrb[0].mxu0
      %388 = vmatprep.mubr.bf16.mxu0 0
      %389 = vmatmul.mubr.bf16.gmra.mrb[0].mxu0 %v332
      %v390 = vpop.f32.mrb[0].mxu0
      %v391 = vadd.f32 0.0, %v390
      %v392 = vpop.f32.mrb[0].mxu0
      %v393 = vpop.f32.mrb[0].mxu0
      %v394 = vadd.f32 0.0, %v393
      %v395 = vpop.f32.mrb[0].mxu0
      %396 = vmatprep.mubr.bf16.mxu0 0
      %397 = vmatmul.mubr.bf16.gmra.mrb[0].mxu0 %v335
      %v398 = vpop.f32.mrb[0].mxu0
      %v399 = vadd.f32 0.0, %v398
      %v400 = vpop.f32.mrb[0].mxu0
      %v401 = vpop.f32.mrb[0].mxu0
      %v402 = vadd.f32 0.0, %v401
      %v403 = vpop.f32.mrb[0].mxu0
      %404 = vmatprep.mubr.bf16.mxu0 0
      %405 = vmatmul.mubr.bf16.gmra.mrb[0].mxu0 %v338
      %v406 = vpop.f32.mrb[0].mxu0
      %v407 = vadd.f32 0.0, %v406
      %v408 = vpop.f32.mrb[0].mxu0
      %v409 = vpop.f32.mrb[0].mxu0
      %v410 = vadd.f32 0.0, %v409
      %v411 = vpop.f32.mrb[0].mxu0
      %412 = vdwg.mxu0
      %v417 = vunpack.c.l.b16 %v230
      %v418 = vunpack.c.l.b16 %v231
      %v419 = vunpack.c.l.b16 %v232
      %v420 = vunpack.c.l.b16 %v233
      %v421 = vpack.c.b16 %v418, %v417
      %v422 = vpack.c.b16 %v420, %v419
      %v425 = vsel %vm324, %v261, 0
      %v427 = vsel %vm324, %v262, 0
      %v429 = vsel %vm324, %v263, 0
      %v431 = vsel %vm324, %v264, 0
      %v433 = vsel %vm324, %v265, 0
      %435 = vmatprep.subr.bf16.mxu0 0
      %436 = vmatpush1.bf16.msra.mxu0 %v421
      %437 = vmatprep.subr.bf16.mxu0 0
      %438 = vmatpush1.bf16.msra.mxu0 %v422
      %439 = vmatprep.subr.bf16.mxu0 0
      %440 = vmatpush1.bf16.msra.mxu0 0
      %441 = vmatprep.subr.bf16.mxu0 0
      %442 = vmatpush1.bf16.msra.mxu0 0
      %443 = vmatprep.subr.bf16.mxu0 0
      %444 = vmatpush1.bf16.msra.mxu0 0
      %445 = vmatprep.subr.bf16.mxu0 0
      %446 = vmatpush1.bf16.msra.mxu0 0
      %447 = vmatprep.subr.bf16.mxu0 0
      %448 = vmatpush1.bf16.msra.mxu0 0
      %449 = vmatprep.subr.bf16.mxu0 0
      %450 = vmatpush1.bf16.msra.mxu0 0
      %451 = vmatprep.subr.bf16.mxu0 0
      %452 = vmatpush1.bf16.msra.mxu0 0
      %453 = vmatprep.subr.bf16.mxu0 0
      %454 = vmatpush1.bf16.msra.mxu0 0
      %455 = vmatprep.subr.bf16.mxu0 0
      %456 = vmatpush1.bf16.msra.mxu0 0
      %457 = vmatprep.subr.bf16.mxu0 0
      %458 = vmatpush1.bf16.msra.mxu0 0
      %459 = vmatprep.subr.bf16.mxu0 0
      %460 = vmatpush1.bf16.msra.mxu0 0
      %461 = vmatprep.subr.bf16.mxu0 0
      %462 = vmatpush1.bf16.msra.mxu0 0
      %463 = vmatprep.subr.bf16.mxu0 0
      %464 = vmatpush1.bf16.msra.mxu0 0
      %465 = vmatprep.subr.bf16.mxu0 0
      %466 = vmatpush1.bf16.msra.mxu0 0
      %467 = vmatprep.mubr.bf16.mxu0 0
      %468 = vmatmul.mubr.bf16.gmra.mrb[0].mxu0 %v425
      %v469 = vpop.f32.mrb[0].mxu0
      %v470 = vadd.f32 %v375, %v469
      %v471 = vpop.f32.mrb[0].mxu0
      %v472 = vpop.f32.mrb[0].mxu0
      %v473 = vadd.f32 %v378, %v472
      %v474 = vpop.f32.mrb[0].mxu0
      %475 = vmatprep.mubr.bf16.mxu0 0
      %476 = vmatmul.mubr.bf16.gmra.mrb[0].mxu0 %v427
      %v477 = vpop.f32.mrb[0].mxu0
      %v478 = vadd.f32 %v383, %v477
      %v479 = vpop.f32.mrb[0].mxu0
      %v480 = vpop.f32.mrb[0].mxu0
      %v481 = vadd.f32 %v386, %v480
      %v482 = vpop.f32.mrb[0].mxu0
      %483 = vmatprep.mubr.bf16.mxu0 0
      %484 = vmatmul.mubr.bf16.gmra.mrb[0].mxu0 %v429
      %v485 = vpop.f32.mrb[0].mxu0
      %v486 = vadd.f32 %v391, %v485
      %v487 = vpop.f32.mrb[0].mxu0
      %v488 = vpop.f32.mrb[0].mxu0
      %v489 = vadd.f32 %v394, %v488
      %v490 = vpop.f32.mrb[0].mxu0
      %491 = vmatprep.mubr.bf16.mxu0 0
      %492 = vmatmul.mubr.bf16.gmra.mrb[0].mxu0 %v431
      %v493 = vpop.f32.mrb[0].mxu0
      %v494 = vadd.f32 %v399, %v493
      %v495 = vpop.f32.mrb[0].mxu0
      %v496 = vpop.f32.mrb[0].mxu0
      %v497 = vadd.f32 %v402, %v496
      %v498 = vpop.f32.mrb[0].mxu0
      %499 = vmatprep.mubr.bf16.mxu0 0
      %500 = vmatmul.mubr.bf16.gmra.mrb[0].mxu0 %v433
      %v501 = vpop.f32.mrb[0].mxu0
      %v502 = vadd.f32 %v407, %v501
      %v503 = vpop.f32.mrb[0].mxu0
      %v504 = vpop.f32.mrb[0].mxu0
      %v505 = vadd.f32 %v410, %v504
      %v506 = vpop.f32.mrb[0].mxu0
      %507 = vdwg.mxu0
      %v508 = vld [vmem:[%s207] sm:$0xe]
      %v509 = vld [vmem:[%s1 + $0x20] sm:$0xf]
      %v510 = vld [vmem:[%s1 + $0x24] sm:$0xf]
      %v511 = vld [vmem:[%s1 + $0x28] sm:$0xf]
      %v512 = vld [vmem:[%s1 + $0x2c] sm:$0xf]
      %v514 = vunpack.c.l.b16 %v508
      %v515 = vpack.c.b16 %v251, %v514
      %vm516 = vcmask 1046528
      %v517 = vrot.slane %v515, 1
      %v518 = vrot.slane %v262, 1
      %v519 = vsel %vm516, %v517, %v518
      %v520 = vrot.slane %v263, 1
      %v521 = vsel %vm516, %v518, %v520
      %v522 = vrot.slane %v264, 1
      %v523 = vsel %vm516, %v520, %v522
      %v524 = vrot.slane %v265, 1
      %v525 = vsel %vm516, %v522, %v524
      %v526 = vrot.slane %v266, 1
      %v527 = vsel %vm516, %v524, %v526
      %v532 = vunpack.c.l.b16 %v509
      %v533 = vunpack.c.l.b16 %v510
      %v534 = vunpack.c.l.b16 %v511
      %v535 = vunpack.c.l.b16 %v512
      %v536 = vpack.c.b16 %v533, %v532
      %v537 = vpack.c.b16 %v535, %v534
      %v541 = vsel %vm324, %v519, 0
      %v544 = vsel %vm324, %v521, 0
      %v547 = vsel %vm324, %v523, 0
      %v550 = vsel %vm324, %v525, 0
      %v553 = vsel %vm324, %v527, 0
      %555 = vmatprep.subr.bf16.mxu0 0
      %556 = vmatpush1.bf16.msra.mxu0 %v536
      %557 = vmatprep.subr.bf16.mxu0 0
      %558 = vmatpush1.bf16.msra.mxu0 %v537
      %559 = vmatprep.subr.bf16.mxu0 0
      %560 = vmatpush1.bf16.msra.mxu0 0
      %561 = vmatprep.subr.bf16.mxu0 0
      %562 = vmatpush1.bf16.msra.mxu0 0
      %563 = vmatprep.subr.bf16.mxu0 0
      %564 = vmatpush1.bf16.msra.mxu0 0
      %565 = vmatprep.subr.bf16.mxu0 0
      %566 = vmatpush1.bf16.msra.mxu0 0
      %567 = vmatprep.subr.bf16.mxu0 0
      %568 = vmatpush1.bf16.msra.mxu0 0
      %569 = vmatprep.subr.bf16.mxu0 0
      %570 = vmatpush1.bf16.msra.mxu0 0
      %571 = vmatprep.subr.bf16.mxu0 0
      %572 = vmatpush1.bf16.msra.mxu0 0
      %573 = vmatprep.subr.bf16.mxu0 0
      %574 = vmatpush1.bf16.msra.mxu0 0
      %575 = vmatprep.subr.bf16.mxu0 0
      %576 = vmatpush1.bf16.msra.mxu0 0
      %577 = vmatprep.subr.bf16.mxu0 0
      %578 = vmatpush1.bf16.msra.mxu0 0
      %579 = vmatprep.subr.bf16.mxu0 0
      %580 = vmatpush1.bf16.msra.mxu0 0
      %581 = vmatprep.subr.bf16.mxu0 0
      %582 = vmatpush1.bf16.msra.mxu0 0
      %583 = vmatprep.subr.bf16.mxu0 0
      %584 = vmatpush1.bf16.msra.mxu0 0
      %585 = vmatprep.subr.bf16.mxu0 0
      %586 = vmatpush1.bf16.msra.mxu0 0
      %587 = vmatprep.mubr.bf16.mxu0 0
      %588 = vmatmul.mubr.bf16.gmra.mrb[0].mxu0 %v541
      %v589 = vpop.f32.mrb[0].mxu0
      %v590 = vadd.f32 0.0, %v589
      %v591 = vpop.f32.mrb[0].mxu0
      %v592 = vpop.f32.mrb[0].mxu0
      %v593 = vadd.f32 0.0, %v592
      %v594 = vpop.f32.mrb[0].mxu0
      %595 = vmatprep.mubr.bf16.mxu0 0
      %596 = vmatmul.mubr.bf16.gmra.mrb[0].mxu0 %v544
      %v597 = vpop.f32.mrb[0].mxu0
      %v598 = vadd.f32 0.0, %v597
      %v599 = vpop.f32.mrb[0].mxu0
      %v600 = vpop.f32.mrb[0].mxu0
      %v601 = vadd.f32 0.0, %v600
      %v602 = vpop.f32.mrb[0].mxu0
      %603 = vmatprep.mubr.bf16.mxu0 0
      %604 = vmatmul.mubr.bf16.gmra.mrb[0].mxu0 %v547
      %v605 = vpop.f32.mrb[0].mxu0
      %v606 = vadd.f32 0.0, %v605
      %v607 = vpop.f32.mrb[0].mxu0
      %v608 = vpop.f32.mrb[0].mxu0
      %v609 = vadd.f32 0.0, %v608
      %v610 = vpop.f32.mrb[0].mxu0
      %611 = vmatprep.mubr.bf16.mxu0 0
      %612 = vmatmul.mubr.bf16.gmra.mrb[0].mxu0 %v550
      %v613 = vpop.f32.mrb[0].mxu0
      %v614 = vadd.f32 0.0, %v613
      %v615 = vpop.f32.mrb[0].mxu0
      %v616 = vpop.f32.mrb[0].mxu0
      %v617 = vadd.f32 0.0, %v616
      %v618 = vpop.f32.mrb[0].mxu0
      %619 = vmatprep.mubr.bf16.mxu0 0
      %620 = vmatmul.mubr.bf16.gmra.mrb[0].mxu0 %v553
      %v621 = vpop.f32.mrb[0].mxu0
      %v622 = vadd.f32 0.0, %v621
      %v623 = vpop.f32.mrb[0].mxu0
      %v624 = vpop.f32.mrb[0].mxu0
      %v625 = vadd.f32 0.0, %v624
      %v626 = vpop.f32.mrb[0].mxu0
      %627 = vdwg.mxu0
      %v628 = vadd.f32 %v470, %v590
      %v629 = vadd.f32 %v473, %v593
      %v630 = vadd.f32 %v478, %v598
      %v631 = vadd.f32 %v481, %v601
      %v632 = vadd.f32 %v486, %v606
      %v633 = vadd.f32 %v489, %v609
      %v634 = vadd.f32 %v494, %v614
      %v635 = vadd.f32 %v497, %v617
      %v636 = vadd.f32 %v502, %v622
      %v637 = vadd.f32 %v505, %v625
      %v638 = vld [vmem:[%s207 + $0x4] sm:$0xe]
      %v639 = vld [vmem:[%s207 + $0x8] sm:$0xf]
      %v640 = vld [vmem:[%s207 + $0xc] sm:$0xf]
      %v641 = vld [vmem:[%s207 + $0x10] sm:$0xf]
      %v642 = vld [vmem:[%s207 + $0x14] sm:$0xf]
      %v643 = vld [vmem:[%s207 + $0x18] sm:$0xf]
      %v644 = vld [vmem:[%s207 + $0x1c] sm:$0xf]
      %v645 = vld [vmem:[%s207 + $0x20] sm:$0xf]
      %v646 = vld [vmem:[%s207 + $0x24] sm:$0xf]
      %v647 = vld [vmem:[%s207 + $0x28] sm:$0xf]
      %v648 = vld [vmem:[%s207 + $0x2c] sm:$0x1]
      %v649 = vld [vmem:[%s1 + $0x30] sm:$0xf]
      %v650 = vld [vmem:[%s1 + $0x34] sm:$0xf]
      %v651 = vld [vmem:[%s1 + $0x38] sm:$0xf]
      %v652 = vld [vmem:[%s1 + $0x3c] sm:$0xf]
      %v664 = vunpack.c.l.b16 %v638
      %v665 = vunpack.c.l.b16 %v639
      %v666 = vunpack.c.l.b16 %v640
      %v667 = vunpack.c.l.b16 %v641
      %v668 = vunpack.c.l.b16 %v642
      %v669 = vunpack.c.l.b16 %v643
      %v670 = vunpack.c.l.b16 %v644
      %v671 = vunpack.c.l.b16 %v645
      %v672 = vunpack.c.l.b16 %v646
      %v673 = vunpack.c.l.b16 %v647
      %v674 = vunpack.c.l.b16 %v648
      %v675 = vpack.c.b16 %v665, %v664
      %v676 = vpack.c.b16 %v667, %v666
      %v677 = vpack.c.b16 %v669, %v668
      %v678 = vpack.c.b16 %v671, %v670
      %v679 = vpack.c.b16 %v673, %v672
      %v680 = vpack.c.b16 %v674, %v674
      %v681 = vrot.slane %v675, 1
      %v682 = vrot.slane %v676, 1
      %v683 = vsel %vm516, %v681, %v682
      %v684 = vrot.slane %v677, 1
      %v685 = vsel %vm516, %v682, %v684
      %v686 = vrot.slane %v678, 1
      %v687 = vsel %vm516, %v684, %v686
      %v688 = vrot.slane %v679, 1
      %v689 = vsel %vm516, %v686, %v688
      %v690 = vrot.slane %v680, 1
      %v691 = vsel %vm516, %v688, %v690
      %v696 = vunpack.c.l.b16 %v649
      %v697 = vunpack.c.l.b16 %v650
      %v698 = vunpack.c.l.b16 %v651
      %v699 = vunpack.c.l.b16 %v652
      %v700 = vpack.c.b16 %v697, %v696
      %v701 = vpack.c.b16 %v699, %v698
      %v705 = vsel %vm324, %v683, 0
      %v708 = vsel %vm324, %v685, 0
      %v711 = vsel %vm324, %v687, 0
      %v714 = vsel %vm324, %v689, 0
      %v717 = vsel %vm324, %v691, 0
      %719 = vmatprep.subr.bf16.mxu0 0
      %720 = vmatpush1.bf16.msra.mxu0 %v700
      %721 = vmatprep.subr.bf16.mxu0 0
      %722 = vmatpush1.bf16.msra.mxu0 %v701
      %723 = vmatprep.subr.bf16.mxu0 0
      %724 = vmatpush1.bf16.msra.mxu0 0
      %725 = vmatprep.subr.bf16.mxu0 0
      %726 = vmatpush1.bf16.msra.mxu0 0
      %727 = vmatprep.subr.bf16.mxu0 0
      %728 = vmatpush1.bf16.msra.mxu0 0
      %729 = vmatprep.subr.bf16.mxu0 0
      %730 = vmatpush1.bf16.msra.mxu0 0
      %731 = vmatprep.subr.bf16.mxu0 0
      %732 = vmatpush1.bf16.msra.mxu0 0
      %733 = vmatprep.subr.bf16.mxu0 0
      %734 = vmatpush1.bf16.msra.mxu0 0
      %735 = vmatprep.subr.bf16.mxu0 0
      %736 = vmatpush1.bf16.msra.mxu0 0
      %737 = vmatprep.subr.bf16.mxu0 0
      %738 = vmatpush1.bf16.msra.mxu0 0
      %739 = vmatprep.subr.bf16.mxu0 0
      %740 = vmatpush1.bf16.msra.mxu0 0
      %741 = vmatprep.subr.bf16.mxu0 0
      %742 = vmatpush1.bf16.msra.mxu0 0
      %743 = vmatprep.subr.bf16.mxu0 0
      %744 = vmatpush1.bf16.msra.mxu0 0
      %745 = vmatprep.subr.bf16.mxu0 0
      %746 = vmatpush1.bf16.msra.mxu0 0
      %747 = vmatprep.subr.bf16.mxu0 0
      %748 = vmatpush1.bf16.msra.mxu0 0
      %749 = vmatprep.subr.bf16.mxu0 0
      %750 = vmatpush1.bf16.msra.mxu0 0
      %751 = vmatprep.mubr.bf16.mxu0 0
      %752 = vmatmul.mubr.bf16.gmra.mrb[0].mxu0 %v705
      %v753 = vpop.f32.mrb[0].mxu0
      %v754 = vadd.f32 0.0, %v753
      %v755 = vpop.f32.mrb[0].mxu0
      %v756 = vpop.f32.mrb[0].mxu0
      %v757 = vadd.f32 0.0, %v756
      %v758 = vpop.f32.mrb[0].mxu0
      %759 = vmatprep.mubr.bf16.mxu0 0
      %760 = vmatmul.mubr.bf16.gmra.mrb[0].mxu0 %v708
      %v761 = vpop.f32.mrb[0].mxu0
      %v762 = vadd.f32 0.0, %v761
      %v763 = vpop.f32.mrb[0].mxu0
      %v764 = vpop.f32.mrb[0].mxu0
      %v765 = vadd.f32 0.0, %v764
      %v766 = vpop.f32.mrb[0].mxu0
      %767 = vmatprep.mubr.bf16.mxu0 0
      %768 = vmatmul.mubr.bf16.gmra.mrb[0].mxu0 %v711
      %v769 = vpop.f32.mrb[0].mxu0
      %v770 = vadd.f32 0.0, %v769
      %v771 = vpop.f32.mrb[0].mxu0
      %v772 = vpop.f32.mrb[0].mxu0
      %v773 = vadd.f32 0.0, %v772
      %v774 = vpop.f32.mrb[0].mxu0
      %775 = vmatprep.mubr.bf16.mxu0 0
      %776 = vmatmul.mubr.bf16.gmra.mrb[0].mxu0 %v714
      %v777 = vpop.f32.mrb[0].mxu0
      %v778 = vadd.f32 0.0, %v777
      %v779 = vpop.f32.mrb[0].mxu0
      %v780 = vpop.f32.mrb[0].mxu0
      %v781 = vadd.f32 0.0, %v780
      %v782 = vpop.f32.mrb[0].mxu0
      %783 = vmatprep.mubr.bf16.mxu0 0
      %784 = vmatmul.mubr.bf16.gmra.mrb[0].mxu0 %v717
      %v785 = vpop.f32.mrb[0].mxu0
      %v786 = vadd.f32 0.0, %v785
      %v787 = vpop.f32.mrb[0].mxu0
      %v788 = vpop.f32.mrb[0].mxu0
      %v789 = vadd.f32 0.0, %v788
      %v790 = vpop.f32.mrb[0].mxu0
      %791 = vdwg.mxu0
      %v792 = vadd.f32 %v628, %v754
      %v793 = vadd.f32 %v629, %v757
      %v794 = vadd.f32 %v630, %v762
      %v795 = vadd.f32 %v631, %v765
      %v796 = vadd.f32 %v632, %v770
      %v797 = vadd.f32 %v633, %v773
      %v798 = vadd.f32 %v634, %v778
      %v799 = vadd.f32 %v635, %v781
      %v800 = vadd.f32 %v636, %v786
      %v801 = vadd.f32 %v637, %v789
      %v802 = vld [vmem:[%s207 + $0x2c] sm:$0x3]
      %v803 = vld [vmem:[%s1 + $0x40] sm:$0xf]
      %v804 = vld [vmem:[%s1 + $0x44] sm:$0xf]
      %v805 = vld [vmem:[%s1 + $0x48] sm:$0xf]
      %v806 = vld [vmem:[%s1 + $0x4c] sm:$0xf]
      %v808 = vunpack.c.l.b16 %v802
      %v809 = vpack.c.b16 %v808, %v808
      %vm810 = vsmask.f32 6400
      %v812 = vshrl.u32 %v675, 16
      %v814 = vrot.slane %v812, 1
      %v815 = vshll.u32 %v675, 16
      %v817 = vrot.slane %v815, 2
      %v818 = vor.u32 %v814, %v817
      %v820 = vshrl.u32 %v676, 16
      %v822 = vrot.slane %v820, 1
      %v823 = vshll.u32 %v676, 16
      %v825 = vrot.slane %v823, 2
      %v826 = vor.u32 %v822, %v825
      %v827 = vsel %vm810, %v818, %v826
      %v829 = vshrl.u32 %v677, 16
      %v831 = vrot.slane %v829, 1
      %v832 = vshll.u32 %v677, 16
      %v834 = vrot.slane %v832, 2
      %v835 = vor.u32 %v831, %v834
      %v836 = vsel %vm810, %v826, %v835
      %v838 = vshrl.u32 %v678, 16
      %v840 = vrot.slane %v838, 1
      %v841 = vshll.u32 %v678, 16
      %v843 = vrot.slane %v841, 2
      %v844 = vor.u32 %v840, %v843
      %v845 = vsel %vm810, %v835, %v844
      %v847 = vshrl.u32 %v679, 16
      %v849 = vrot.slane %v847, 1
      %v850 = vshll.u32 %v679, 16
      %v852 = vrot.slane %v850, 2
      %v853 = vor.u32 %v849, %v852
      %v854 = vsel %vm810, %v844, %v853
      %v856 = vshrl.u32 %v809, 16
      %v858 = vrot.slane %v856, 1
      %v859 = vshll.u32 %v809, 16
      %v861 = vrot.slane %v859, 2
      %v862 = vor.u32 %v858, %v861
      %v863 = vsel %vm810, %v853, %v862
      %v868 = vunpack.c.l.b16 %v803
      %v869 = vunpack.c.l.b16 %v804
      %v870 = vunpack.c.l.b16 %v805
      %v871 = vunpack.c.l.b16 %v806
      %v872 = vpack.c.b16 %v869, %v868
      %v873 = vpack.c.b16 %v871, %v870
      %v877 = vsel %vm324, %v827, 0
      %v880 = vsel %vm324, %v836, 0
      %v883 = vsel %vm324, %v845, 0
      %v886 = vsel %vm324, %v854, 0
      %v889 = vsel %vm324, %v863, 0
      %891 = vmatprep.subr.bf16.mxu0 0
      %892 = vmatpush1.bf16.msra.mxu0 %v872
      %893 = vmatprep.subr.bf16.mxu0 0
      %894 = vmatpush1.bf16.msra.mxu0 %v873
      %895 = vmatprep.subr.bf16.mxu0 0
      %896 = vmatpush1.bf16.msra.mxu0 0
      %897 = vmatprep.subr.bf16.mxu0 0
      %898 = vmatpush1.bf16.msra.mxu0 0
      %899 = vmatprep.subr.bf16.mxu0 0
      %900 = vmatpush1.bf16.msra.mxu0 0
      %901 = vmatprep.subr.bf16.mxu0 0
      %902 = vmatpush1.bf16.msra.mxu0 0
      %903 = vmatprep.subr.bf16.mxu0 0
      %904 = vmatpush1.bf16.msra.mxu0 0
      %905 = vmatprep.subr.bf16.mxu0 0
      %906 = vmatpush1.bf16.msra.mxu0 0
      %907 = vmatprep.subr.bf16.mxu0 0
      %908 = vmatpush1.bf16.msra.mxu0 0
      %909 = vmatprep.subr.bf16.mxu0 0
      %910 = vmatpush1.bf16.msra.mxu0 0
      %911 = vmatprep.subr.bf16.mxu0 0
      %912 = vmatpush1.bf16.msra.mxu0 0
      %913 = vmatprep.subr.bf16.mxu0 0
      %914 = vmatpush1.bf16.msra.mxu0 0
      %915 = vmatprep.subr.bf16.mxu0 0
      %916 = vmatpush1.bf16.msra.mxu0 0
      %917 = vmatprep.subr.bf16.mxu0 0
      %918 = vmatpush1.bf16.msra.mxu0 0
      %919 = vmatprep.subr.bf16.mxu0 0
      %920 = vmatpush1.bf16.msra.mxu0 0
      %921 = vmatprep.subr.bf16.mxu0 0
      %922 = vmatpush1.bf16.msra.mxu0 0
      %923 = vmatprep.mubr.bf16.mxu0 0
      %924 = vmatmul.mubr.bf16.gmra.mrb[0].mxu0 %v877
      %v925 = vpop.f32.mrb[0].mxu0
      %v926 = vadd.f32 0.0, %v925
      %v927 = vpop.f32.mrb[0].mxu0
      %v928 = vpop.f32.mrb[0].mxu0
      %v929 = vadd.f32 0.0, %v928
      %v930 = vpop.f32.mrb[0].mxu0
      %931 = vmatprep.mubr.bf16.mxu0 0
      %932 = vmatmul.mubr.bf16.gmra.mrb[0].mxu0 %v880
      %v933 = vpop.f32.mrb[0].mxu0
      %v934 = vadd.f32 0.0, %v933
      %v935 = vpop.f32.mrb[0].mxu0
      %v936 = vpop.f32.mrb[0].mxu0
      %v937 = vadd.f32 0.0, %v936
      %v938 = vpop.f32.mrb[0].mxu0
      %939 = vmatprep.mubr.bf16.mxu0 0
      %940 = vmatmul.mubr.bf16.gmra.mrb[0].mxu0 %v883
      %v941 = vpop.f32.mrb[0].mxu0
      %v942 = vadd.f32 0.0, %v941
      %v943 = vpop.f32.mrb[0].mxu0
      %v944 = vpop.f32.mrb[0].mxu0
      %v945 = vadd.f32 0.0, %v944
      %v946 = vpop.f32.mrb[0].mxu0
      %947 = vmatprep.mubr.bf16.mxu0 0
      %948 = vmatmul.mubr.bf16.gmra.mrb[0].mxu0 %v886
      %v949 = vpop.f32.mrb[0].mxu0
      %v950 = vadd.f32 0.0, %v949
      %v951 = vpop.f32.mrb[0].mxu0
      %v952 = vpop.f32.mrb[0].mxu0
      %v953 = vadd.f32 0.0, %v952
      %v954 = vpop.f32.mrb[0].mxu0
      %955 = vmatprep.mubr.bf16.mxu0 0
      %956 = vmatmul.mubr.bf16.gmra.mrb[0].mxu0 %v889
      %v957 = vpop.f32.mrb[0].mxu0
      %v958 = vadd.f32 0.0, %v957
      %v959 = vpop.f32.mrb[0].mxu0
      %v960 = vpop.f32.mrb[0].mxu0
      %v961 = vadd.f32 0.0, %v960
      %v962 = vpop.f32.mrb[0].mxu0
      %963 = vdwg.mxu0
      %v964 = vadd.f32 %v792, %v926
      %v965 = vadd.f32 %v793, %v929
      %v966 = vadd.f32 %v794, %v934
      %v967 = vadd.f32 %v795, %v937
      %v968 = vadd.f32 %v796, %v942
      %v969 = vadd.f32 %v797, %v945
      %v970 = vadd.f32 %v798, %v950
      %v971 = vadd.f32 %v799, %v953
      %v972 = vadd.f32 %v800, %v958
      %v973 = vadd.f32 %v801, %v961
      %v974 = vld [vmem:[%s207 + $0x4] sm:$0xc]
      %v975 = vld [vmem:[%s1 + $0x50] sm:$0xf]
      %v976 = vld [vmem:[%s1 + $0x54] sm:$0xf]
      %v977 = vld [vmem:[%s1 + $0x58] sm:$0xf]
      %v978 = vld [vmem:[%s1 + $0x5c] sm:$0xf]
      %v980 = vunpack.c.l.b16 %v974
      %v981 = vpack.c.b16 %v665, %v980
      %vm982 = vcmask 1045504
      %v983 = vrot.slane %v981, 2
      %v984 = vrot.slane %v676, 2
      %v985 = vsel %vm982, %v983, %v984
      %v986 = vrot.slane %v677, 2
      %v987 = vsel %vm982, %v984, %v986
      %v988 = vrot.slane %v678, 2
      %v989 = vsel %vm982, %v986, %v988
      %v990 = vrot.slane %v679, 2
      %v991 = vsel %vm982, %v988, %v990
      %v992 = vrot.slane %v809, 2
      %v993 = vsel %vm982, %v990, %v992
      %v998 = vunpack.c.l.b16 %v975
      %v999 = vunpack.c.l.b16 %v976
      %v1000 = vunpack.c.l.b16 %v977
      %v1001 = vunpack.c.l.b16 %v978
      %v1002 = vpack.c.b16 %v999, %v998
      %v1003 = vpack.c.b16 %v1001, %v1000
      %v1007 = vsel %vm324, %v985, 0
      %v1010 = vsel %vm324, %v987, 0
      %v1013 = vsel %vm324, %v989, 0
      %v1016 = vsel %vm324, %v991, 0
      %v1019 = vsel %vm324, %v993, 0
      %1021 = vmatprep.subr.bf16.mxu0 0
      %1022 = vmatpush1.bf16.msra.mxu0 %v1002
      %1023 = vmatprep.subr.bf16.mxu0 0
      %1024 = vmatpush1.bf16.msra.mxu0 %v1003
      %1025 = vmatprep.subr.bf16.mxu0 0
      %1026 = vmatpush1.bf16.msra.mxu0 0
      %1027 = vmatprep.subr.bf16.mxu0 0
      %1028 = vmatpush1.bf16.msra.mxu0 0
      %1029 = vmatprep.subr.bf16.mxu0 0
      %1030 = vmatpush1.bf16.msra.mxu0 0
      %1031 = vmatprep.subr.bf16.mxu0 0
      %1032 = vmatpush1.bf16.msra.mxu0 0
      %1033 = vmatprep.subr.bf16.mxu0 0
      %1034 = vmatpush1.bf16.msra.mxu0 0
      %1035 = vmatprep.subr.bf16.mxu0 0
      %1036 = vmatpush1.bf16.msra.mxu0 0
      %1037 = vmatprep.subr.bf16.mxu0 0
      %1038 = vmatpush1.bf16.msra.mxu0 0
      %1039 = vmatprep.subr.bf16.mxu0 0
      %1040 = vmatpush1.bf16.msra.mxu0 0
      %1041 = vmatprep.subr.bf16.mxu0 0
      %1042 = vmatpush1.bf16.msra.mxu0 0
      %1043 = vmatprep.subr.bf16.mxu0 0
      %1044 = vmatpush1.bf16.msra.mxu0 0
      %1045 = vmatprep.subr.bf16.mxu0 0
      %1046 = vmatpush1.bf16.msra.mxu0 0
      %1047 = vmatprep.subr.bf16.mxu0 0
      %1048 = vmatpush1.bf16.msra.mxu0 0
      %1049 = vmatprep.subr.bf16.mxu0 0
      %1050 = vmatpush1.bf16.msra.mxu0 0
      %1051 = vmatprep.subr.bf16.mxu0 0
      %1052 = vmatpush1.bf16.msra.mxu0 0
      %1053 = vmatprep.mubr.bf16.mxu0 0
      %1054 = vmatmul.mubr.bf16.gmra.mrb[0].mxu0 %v1007
      %v1055 = vpop.f32.mrb[0].mxu0
      %v1056 = vadd.f32 0.0, %v1055
      %v1057 = vpop.f32.mrb[0].mxu0
      %v1058 = vpop.f32.mrb[0].mxu0
      %v1059 = vadd.f32 0.0, %v1058
      %v1060 = vpop.f32.mrb[0].mxu0
      %1061 = vmatprep.mubr.bf16.mxu0 0
      %1062 = vmatmul.mubr.bf16.gmra.mrb[0].mxu0 %v1010
      %v1063 = vpop.f32.mrb[0].mxu0
      %v1064 = vadd.f32 0.0, %v1063
      %v1065 = vpop.f32.mrb[0].mxu0
      %v1066 = vpop.f32.mrb[0].mxu0
      %v1067 = vadd.f32 0.0, %v1066
      %v1068 = vpop.f32.mrb[0].mxu0
      %1069 = vmatprep.mubr.bf16.mxu0 0
      %1070 = vmatmul.mubr.bf16.gmra.mrb[0].mxu0 %v1013
      %v1071 = vpop.f32.mrb[0].mxu0
      %v1072 = vadd.f32 0.0, %v1071
      %v1073 = vpop.f32.mrb[0].mxu0
      %v1074 = vpop.f32.mrb[0].mxu0
      %v1075 = vadd.f32 0.0, %v1074
      %v1076 = vpop.f32.mrb[0].mxu0
      %1077 = vmatprep.mubr.bf16.mxu0 0
      %1078 = vmatmul.mubr.bf16.gmra.mrb[0].mxu0 %v1016
      %v1079 = vpop.f32.mrb[0].mxu0
      %v1080 = vadd.f32 0.0, %v1079
      %v1081 = vpop.f32.mrb[0].mxu0
      %v1082 = vpop.f32.mrb[0].mxu0
      %v1083 = vadd.f32 0.0, %v1082
      %v1084 = vpop.f32.mrb[0].mxu0
      %1085 = vmatprep.mubr.bf16.mxu0 0
      %1086 = vmatmul.mubr.bf16.gmra.mrb[0].mxu0 %v1019
      %v1087 = vpop.f32.mrb[0].mxu0
      %v1088 = vadd.f32 0.0, %v1087
      %v1089 = vpop.f32.mrb[0].mxu0
      %v1090 = vpop.f32.mrb[0].mxu0
      %v1091 = vadd.f32 0.0, %v1090
      %v1092 = vpop.f32.mrb[0].mxu0
      %1093 = vdwg.mxu0
      %v1094 = vadd.f32 %v964, %v1056
      %v1095 = vadd.f32 %v965, %v1059
      %v1096 = vadd.f32 %v966, %v1064
      %v1097 = vadd.f32 %v967, %v1067
      %v1098 = vadd.f32 %v968, %v1072
      %v1099 = vadd.f32 %v969, %v1075
      %v1100 = vadd.f32 %v970, %v1080
      %v1101 = vadd.f32 %v971, %v1083
      %v1102 = vadd.f32 %v972, %v1088
      %v1103 = vadd.f32 %v973, %v1091
      %v1104 = vld [vmem:[%s207 + $0x8] sm:$0xc]
      %v1105 = vld [vmem:[%s207 + $0xc] sm:$0xf]
      %v1106 = vld [vmem:[%s207 + $0x10] sm:$0xf]
      %v1107 = vld [vmem:[%s207 + $0x14] sm:$0xf]
      %v1108 = vld [vmem:[%s207 + $0x18] sm:$0xf]
      %v1109 = vld [vmem:[%s207 + $0x1c] sm:$0xf]
      %v1110 = vld [vmem:[%s207 + $0x20] sm:$0xf]
      %v1111 = vld [vmem:[%s207 + $0x24] sm:$0xf]
      %v1112 = vld [vmem:[%s207 + $0x28] sm:$0xf]
      %v1113 = vld [vmem:[%s207 + $0x2c] sm:$0xf]
      %v1114 = vld [vmem:[%s207 + $0x30] sm:$0x3]
      %v1115 = vld [vmem:[%s1 + $0x60] sm:$0xf]
      %v1116 = vld [vmem:[%s1 + $0x64] sm:$0xf]
      %v1117 = vld [vmem:[%s1 + $0x68] sm:$0xf]
      %v1118 = vld [vmem:[%s1 + $0x6c] sm:$0xf]
      %v1130 = vunpack.c.l.b16 %v1104
      %v1131 = vunpack.c.l.b16 %v1105
      %v1132 = vunpack.c.l.b16 %v1106
      %v1133 = vunpack.c.l.b16 %v1107
      %v1134 = vunpack.c.l.b16 %v1108
      %v1135 = vunpack.c.l.b16 %v1109
      %v1136 = vunpack.c.l.b16 %v1110
      %v1137 = vunpack.c.l.b16 %v1111
      %v1138 = vunpack.c.l.b16 %v1112
      %v1139 = vunpack.c.l.b16 %v1113
      %v1140 = vunpack.c.l.b16 %v1114
      %v1141 = vpack.c.b16 %v1131, %v1130
      %v1142 = vpack.c.b16 %v1133, %v1132
      %v1143 = vpack.c.b16 %v1135, %v1134
      %v1144 = vpack.c.b16 %v1137, %v1136
      %v1145 = vpack.c.b16 %v1139, %v1138
      %v1146 = vpack.c.b16 %v1140, %v1140
      %v1147 = vrot.slane %v1141, 2
      %v1148 = vrot.slane %v1142, 2
      %v1149 = vsel %vm982, %v1147, %v1148
      %v1150 = vrot.slane %v1143, 2
      %v1151 = vsel %vm982, %v1148, %v1150
      %v1152 = vrot.slane %v1144, 2
      %v1153 = vsel %vm982, %v1150, %v1152
      %v1154 = vrot.slane %v1145, 2
      %v1155 = vsel %vm982, %v1152, %v1154
      %v1156 = vrot.slane %v1146, 2
      %v1157 = vsel %vm982, %v1154, %v1156
      %v1162 = vunpack.c.l.b16 %v1115
      %v1163 = vunpack.c.l.b16 %v1116
      %v1164 = vunpack.c.l.b16 %v1117
      %v1165 = vunpack.c.l.b16 %v1118
      %v1166 = vpack.c.b16 %v1163, %v1162
      %v1167 = vpack.c.b16 %v1165, %v1164
      %v1171 = vsel %vm324, %v1149, 0
      %v1174 = vsel %vm324, %v1151, 0
      %v1177 = vsel %vm324, %v1153, 0
      %v1180 = vsel %vm324, %v1155, 0
      %v1183 = vsel %vm324, %v1157, 0
      %1185 = vmatprep.subr.bf16.mxu0 0
      %1186 = vmatpush1.bf16.msra.mxu0 %v1166
      %1187 = vmatprep.subr.bf16.mxu0 0
      %1188 = vmatpush1.bf16.msra.mxu0 %v1167
      %1189 = vmatprep.subr.bf16.mxu0 0
      %1190 = vmatpush1.bf16.msra.mxu0 0
      %1191 = vmatprep.subr.bf16.mxu0 0
      %1192 = vmatpush1.bf16.msra.mxu0 0
      %1193 = vmatprep.subr.bf16.mxu0 0
      %1194 = vmatpush1.bf16.msra.mxu0 0
      %1195 = vmatprep.subr.bf16.mxu0 0
      %1196 = vmatpush1.bf16.msra.mxu0 0
      %1197 = vmatprep.subr.bf16.mxu0 0
      %1198 = vmatpush1.bf16.msra.mxu0 0
      %1199 = vmatprep.subr.bf16.mxu0 0
      %1200 = vmatpush1.bf16.msra.mxu0 0
      %1201 = vmatprep.subr.bf16.mxu0 0
      %1202 = vmatpush1.bf16.msra.mxu0 0
      %1203 = vmatprep.subr.bf16.mxu0 0
      %1204 = vmatpush1.bf16.msra.mxu0 0
      %1205 = vmatprep.subr.bf16.mxu0 0
      %1206 = vmatpush1.bf16.msra.mxu0 0
      %1207 = vmatprep.subr.bf16.mxu0 0
      %1208 = vmatpush1.bf16.msra.mxu0 0
      %1209 = vmatprep.subr.bf16.mxu0 0
      %1210 = vmatpush1.bf16.msra.mxu0 0
      %1211 = vmatprep.subr.bf16.mxu0 0
      %1212 = vmatpush1.bf16.msra.mxu0 0
      %1213 = vmatprep.subr.bf16.mxu0 0
      %1214 = vmatpush1.bf16.msra.mxu0 0
      %1215 = vmatprep.subr.bf16.mxu0 0
      %1216 = vmatpush1.bf16.msra.mxu0 0
      %1217 = vmatprep.mubr.bf16.mxu0 0
      %1218 = vmatmul.mubr.bf16.gmra.mrb[0].mxu0 %v1171
      %v1219 = vpop.f32.mrb[0].mxu0
      %v1220 = vadd.f32 0.0, %v1219
      %v1221 = vpop.f32.mrb[0].mxu0
      %v1222 = vpop.f32.mrb[0].mxu0
      %v1223 = vadd.f32 0.0, %v1222
      %v1224 = vpop.f32.mrb[0].mxu0
      %1225 = vmatprep.mubr.bf16.mxu0 0
      %1226 = vmatmul.mubr.bf16.gmra.mrb[0].mxu0 %v1174
      %v1227 = vpop.f32.mrb[0].mxu0
      %v1228 = vadd.f32 0.0, %v1227
      %v1229 = vpop.f32.mrb[0].mxu0
      %v1230 = vpop.f32.mrb[0].mxu0
      %v1231 = vadd.f32 0.0, %v1230
      %v1232 = vpop.f32.mrb[0].mxu0
      %1233 = vmatprep.mubr.bf16.mxu0 0
      %1234 = vmatmul.mubr.bf16.gmra.mrb[0].mxu0 %v1177
      %v1235 = vpop.f32.mrb[0].mxu0
      %v1236 = vadd.f32 0.0, %v1235
      %v1237 = vpop.f32.mrb[0].mxu0
      %v1238 = vpop.f32.mrb[0].mxu0
      %v1239 = vadd.f32 0.0, %v1238
      %v1240 = vpop.f32.mrb[0].mxu0
      %1241 = vmatprep.mubr.bf16.mxu0 0
      %1242 = vmatmul.mubr.bf16.gmra.mrb[0].mxu0 %v1180
      %v1243 = vpop.f32.mrb[0].mxu0
      %v1244 = vadd.f32 0.0, %v1243
      %v1245 = vpop.f32.mrb[0].mxu0
      %v1246 = vpop.f32.mrb[0].mxu0
      %v1247 = vadd.f32 0.0, %v1246
      %v1248 = vpop.f32.mrb[0].mxu0
      %1249 = vmatprep.mubr.bf16.mxu0 0
      %1250 = vmatmul.mubr.bf16.gmra.mrb[0].mxu0 %v1183
      %v1251 = vpop.f32.mrb[0].mxu0
      %v1252 = vadd.f32 0.0, %v1251
      %v1253 = vpop.f32.mrb[0].mxu0
      %v1254 = vpop.f32.mrb[0].mxu0
      %v1255 = vadd.f32 0.0, %v1254
      %v1256 = vpop.f32.mrb[0].mxu0
      %1257 = vdwg.mxu0
      %v1258 = vadd.f32 %v1094, %v1220
      %v1259 = vadd.f32 %v1095, %v1223
      %v1260 = vadd.f32 %v1096, %v1228
      %v1261 = vadd.f32 %v1097, %v1231
      %v1262 = vadd.f32 %v1098, %v1236
      %v1263 = vadd.f32 %v1099, %v1239
      %v1264 = vadd.f32 %v1100, %v1244
      %v1265 = vadd.f32 %v1101, %v1247
      %v1266 = vadd.f32 %v1102, %v1252
      %v1267 = vadd.f32 %v1103, %v1255
      %v1268 = vld [vmem:[%s207 + $0x30] sm:$0x7]
      %v1269 = vld [vmem:[%s1 + $0x70] sm:$0xf]
      %v1270 = vld [vmem:[%s1 + $0x74] sm:$0xf]
      %v1271 = vld [vmem:[%s1 + $0x78] sm:$0xf]
      %v1272 = vld [vmem:[%s1 + $0x7c] sm:$0xf]
      %v1274 = vunpack.c.l.b16 %v1268
      %v1275 = vpack.c.b16 %v1274, %v1274
      %vm1276 = vsmask.f32 5376
      %v1278 = vshrl.u32 %v1141, 16
      %v1280 = vrot.slane %v1278, 2
      %v1281 = vshll.u32 %v1141, 16
      %v1283 = vrot.slane %v1281, 3
      %v1284 = vor.u32 %v1280, %v1283
      %v1286 = vshrl.u32 %v1142, 16
      %v1288 = vrot.slane %v1286, 2
      %v1289 = vshll.u32 %v1142, 16
      %v1291 = vrot.slane %v1289, 3
      %v1292 = vor.u32 %v1288, %v1291
      %v1293 = vsel %vm1276, %v1284, %v1292
      %v1295 = vshrl.u32 %v1143, 16
      %v1297 = vrot.slane %v1295, 2
      %v1298 = vshll.u32 %v1143, 16
      %v1300 = vrot.slane %v1298, 3
      %v1301 = vor.u32 %v1297, %v1300
      %v1302 = vsel %vm1276, %v1292, %v1301
      %v1304 = vshrl.u32 %v1144, 16
      %v1306 = vrot.slane %v1304, 2
      %v1307 = vshll.u32 %v1144, 16
      %v1309 = vrot.slane %v1307, 3
      %v1310 = vor.u32 %v1306, %v1309
      %v1311 = vsel %vm1276, %v1301, %v1310
      %v1313 = vshrl.u32 %v1145, 16
      %v1315 = vrot.slane %v1313, 2
      %v1316 = vshll.u32 %v1145, 16
      %v1318 = vrot.slane %v1316, 3
      %v1319 = vor.u32 %v1315, %v1318
      %v1320 = vsel %vm1276, %v1310, %v1319
      %v1322 = vshrl.u32 %v1275, 16
      %v1324 = vrot.slane %v1322, 2
      %v1325 = vshll.u32 %v1275, 16
      %v1327 = vrot.slane %v1325, 3
      %v1328 = vor.u32 %v1324, %v1327
      %v1329 = vsel %vm1276, %v1319, %v1328
      %v1334 = vunpack.c.l.b16 %v1269
      %v1335 = vunpack.c.l.b16 %v1270
      %v1336 = vunpack.c.l.b16 %v1271
      %v1337 = vunpack.c.l.b16 %v1272
      %v1338 = vpack.c.b16 %v1335, %v1334
      %v1339 = vpack.c.b16 %v1337, %v1336
      %v1343 = vsel %vm324, %v1293, 0
      %v1346 = vsel %vm324, %v1302, 0
      %v1349 = vsel %vm324, %v1311, 0
      %v1352 = vsel %vm324, %v1320, 0
      %v1355 = vsel %vm324, %v1329, 0
      %1357 = vmatprep.subr.bf16.mxu0 0
      %1358 = vmatpush1.bf16.msra.mxu0 %v1338
      %1359 = vmatprep.subr.bf16.mxu0 0
      %1360 = vmatpush1.bf16.msra.mxu0 %v1339
      %1361 = vmatprep.subr.bf16.mxu0 0
      %1362 = vmatpush1.bf16.msra.mxu0 0
      %1363 = vmatprep.subr.bf16.mxu0 0
      %1364 = vmatpush1.bf16.msra.mxu0 0
      %1365 = vmatprep.subr.bf16.mxu0 0
      %1366 = vmatpush1.bf16.msra.mxu0 0
      %1367 = vmatprep.subr.bf16.mxu0 0
      %1368 = vmatpush1.bf16.msra.mxu0 0
      %1369 = vmatprep.subr.bf16.mxu0 0
      %1370 = vmatpush1.bf16.msra.mxu0 0
      %1371 = vmatprep.subr.bf16.mxu0 0
      %1372 = vmatpush1.bf16.msra.mxu0 0
      %1373 = vmatprep.subr.bf16.mxu0 0
      %1374 = vmatpush1.bf16.msra.mxu0 0
      %1375 = vmatprep.subr.bf16.mxu0 0
      %1376 = vmatpush1.bf16.msra.mxu0 0
      %1377 = vmatprep.subr.bf16.mxu0 0
      %1378 = vmatpush1.bf16.msra.mxu0 0
      %1379 = vmatprep.subr.bf16.mxu0 0
      %1380 = vmatpush1.bf16.msra.mxu0 0
      %1381 = vmatprep.subr.bf16.mxu0 0
      %1382 = vmatpush1.bf16.msra.mxu0 0
      %1383 = vmatprep.subr.bf16.mxu0 0
      %1384 = vmatpush1.bf16.msra.mxu0 0
      %1385 = vmatprep.subr.bf16.mxu0 0
      %1386 = vmatpush1.bf16.msra.mxu0 0
      %1387 = vmatprep.subr.bf16.mxu0 0
      %1388 = vmatpush1.bf16.msra.mxu0 0
      %1389 = vmatprep.mubr.bf16.mxu0 0
      %1390 = vmatmul.mubr.bf16.gmra.mrb[0].mxu0 %v1343
      %v1391 = vpop.f32.mrb[0].mxu0
      %v1392 = vadd.f32 0.0, %v1391
      %v1393 = vpop.f32.mrb[0].mxu0
      %v1394 = vpop.f32.mrb[0].mxu0
      %v1395 = vadd.f32 0.0, %v1394
      %v1396 = vpop.f32.mrb[0].mxu0
      %1397 = vmatprep.mubr.bf16.mxu0 0
      %1398 = vmatmul.mubr.bf16.gmra.mrb[0].mxu0 %v1346
      %v1399 = vpop.f32.mrb[0].mxu0
      %v1400 = vadd.f32 0.0, %v1399
      %v1401 = vpop.f32.mrb[0].mxu0
      %v1402 = vpop.f32.mrb[0].mxu0
      %v1403 = vadd.f32 0.0, %v1402
      %v1404 = vpop.f32.mrb[0].mxu0
      %1405 = vmatprep.mubr.bf16.mxu0 0
      %1406 = vmatmul.mubr.bf16.gmra.mrb[0].mxu0 %v1349
      %v1407 = vpop.f32.mrb[0].mxu0
      %v1408 = vadd.f32 0.0, %v1407
      %v1409 = vpop.f32.mrb[0].mxu0
      %v1410 = vpop.f32.mrb[0].mxu0
      %v1411 = vadd.f32 0.0, %v1410
      %v1412 = vpop.f32.mrb[0].mxu0
      %1413 = vmatprep.mubr.bf16.mxu0 0
      %1414 = vmatmul.mubr.bf16.gmra.mrb[0].mxu0 %v1352
      %v1415 = vpop.f32.mrb[0].mxu0
      %v1416 = vadd.f32 0.0, %v1415
      %v1417 = vpop.f32.mrb[0].mxu0
      %v1418 = vpop.f32.mrb[0].mxu0
      %v1419 = vadd.f32 0.0, %v1418
      %v1420 = vpop.f32.mrb[0].mxu0
      %1421 = vmatprep.mubr.bf16.mxu0 0
      %1422 = vmatmul.mubr.bf16.gmra.mrb[0].mxu0 %v1355
      %v1423 = vpop.f32.mrb[0].mxu0
      %v1424 = vadd.f32 0.0, %v1423
      %v1425 = vpop.f32.mrb[0].mxu0
      %v1426 = vpop.f32.mrb[0].mxu0
      %v1427 = vadd.f32 0.0, %v1426
      %v1428 = vpop.f32.mrb[0].mxu0
      %1429 = vdwg.mxu0
      %v1430 = vadd.f32 %v1258, %v1392
      %v1431 = vadd.f32 %v1259, %v1395
      %v1432 = vadd.f32 %v1260, %v1400
      %v1433 = vadd.f32 %v1261, %v1403
      %v1434 = vadd.f32 %v1262, %v1408
      %v1435 = vadd.f32 %v1263, %v1411
      %v1436 = vadd.f32 %v1264, %v1416
      %v1437 = vadd.f32 %v1265, %v1419
      %v1438 = vadd.f32 %v1266, %v1424
      %v1439 = vadd.f32 %v1267, %v1427
      %v1440 = vld [vmem:[%s207 + $0x8] sm:$0x8]
      %v1441 = vld [vmem:[%s1 + $0x80] sm:$0xf]
      %v1442 = vld [vmem:[%s1 + $0x84] sm:$0xf]
      %v1443 = vld [vmem:[%s1 + $0x88] sm:$0xf]
      %v1444 = vld [vmem:[%s1 + $0x8c] sm:$0xf]
      %v1446 = vunpack.c.l.b16 %v1440
      %v1447 = vpack.c.b16 %v1131, %v1446
      %vm1448 = vcmask 1044480
      %v1449 = vrot.slane %v1447, 3
      %v1450 = vrot.slane %v1142, 3
      %v1451 = vsel %vm1448, %v1449, %v1450
      %v1452 = vrot.slane %v1143, 3
      %v1453 = vsel %vm1448, %v1450, %v1452
      %v1454 = vrot.slane %v1144, 3
      %v1455 = vsel %vm1448, %v1452, %v1454
      %v1456 = vrot.slane %v1145, 3
      %v1457 = vsel %vm1448, %v1454, %v1456
      %v1458 = vrot.slane %v1275, 3
      %v1459 = vsel %vm1448, %v1456, %v1458
      %v1464 = vunpack.c.l.b16 %v1441
      %v1465 = vunpack.c.l.b16 %v1442
      %v1466 = vunpack.c.l.b16 %v1443
      %v1467 = vunpack.c.l.b16 %v1444
      %v1468 = vpack.c.b16 %v1465, %v1464
      %v1469 = vpack.c.b16 %v1467, %v1466
      %v1473 = vsel %vm324, %v1451, 0
      %v1476 = vsel %vm324, %v1453, 0
      %v1479 = vsel %vm324, %v1455, 0
      %v1482 = vsel %vm324, %v1457, 0
      %v1485 = vsel %vm324, %v1459, 0
      %1487 = vmatprep.subr.bf16.mxu0 0
      %1488 = vmatpush1.bf16.msra.mxu0 %v1468
      %1489 = vmatprep.subr.bf16.mxu0 0
      %1490 = vmatpush1.bf16.msra.mxu0 %v1469
      %1491 = vmatprep.subr.bf16.mxu0 0
      %1492 = vmatpush1.bf16.msra.mxu0 0
      %1493 = vmatprep.subr.bf16.mxu0 0
      %1494 = vmatpush1.bf16.msra.mxu0 0
      %1495 = vmatprep.subr.bf16.mxu0 0
      %1496 = vmatpush1.bf16.msra.mxu0 0
      %1497 = vmatprep.subr.bf16.mxu0 0
      %1498 = vmatpush1.bf16.msra.mxu0 0
      %1499 = vmatprep.subr.bf16.mxu0 0
      %1500 = vmatpush1.bf16.msra.mxu0 0
      %1501 = vmatprep.subr.bf16.mxu0 0
      %1502 = vmatpush1.bf16.msra.mxu0 0
      %1503 = vmatprep.subr.bf16.mxu0 0
      %1504 = vmatpush1.bf16.msra.mxu0 0
      %1505 = vmatprep.subr.bf16.mxu0 0
      %1506 = vmatpush1.bf16.msra.mxu0 0
      %1507 = vmatprep.subr.bf16.mxu0 0
      %1508 = vmatpush1.bf16.msra.mxu0 0
      %1509 = vmatprep.subr.bf16.mxu0 0
      %1510 = vmatpush1.bf16.msra.mxu0 0
      %1511 = vmatprep.subr.bf16.mxu0 0
      %1512 = vmatpush1.bf16.msra.mxu0 0
      %1513 = vmatprep.subr.bf16.mxu0 0
      %1514 = vmatpush1.bf16.msra.mxu0 0
      %1515 = vmatprep.subr.bf16.mxu0 0
      %1516 = vmatpush1.bf16.msra.mxu0 0
      %1517 = vmatprep.subr.bf16.mxu0 0
      %1518 = vmatpush1.bf16.msra.mxu0 0
      %1519 = vmatprep.mubr.bf16.mxu0 0
      %1520 = vmatmul.mubr.bf16.gmra.mrb[0].mxu0 %v1473
      %v1521 = vpop.f32.mrb[0].mxu0
      %v1522 = vadd.f32 0.0, %v1521
      %v1523 = vpop.f32.mrb[0].mxu0
      %v1524 = vpop.f32.mrb[0].mxu0
      %v1525 = vadd.f32 0.0, %v1524
      %v1526 = vpop.f32.mrb[0].mxu0
      %1527 = vmatprep.mubr.bf16.mxu0 0
      %1528 = vmatmul.mubr.bf16.gmra.mrb[0].mxu0 %v1476
      %v1529 = vpop.f32.mrb[0].mxu0
      %v1530 = vadd.f32 0.0, %v1529
      %v1531 = vpop.f32.mrb[0].mxu0
      %v1532 = vpop.f32.mrb[0].mxu0
      %v1533 = vadd.f32 0.0, %v1532
      %v1534 = vpop.f32.mrb[0].mxu0
      %1535 = vmatprep.mubr.bf16.mxu0 0
      %1536 = vmatmul.mubr.bf16.gmra.mrb[0].mxu0 %v1479
      %v1537 = vpop.f32.mrb[0].mxu0
      %v1538 = vadd.f32 0.0, %v1537
      %v1539 = vpop.f32.mrb[0].mxu0
      %v1540 = vpop.f32.mrb[0].mxu0
      %v1541 = vadd.f32 0.0, %v1540
      %v1542 = vpop.f32.mrb[0].mxu0
      %1543 = vmatprep.mubr.bf16.mxu0 0
      %1544 = vmatmul.mubr.bf16.gmra.mrb[0].mxu0 %v1482
      %v1545 = vpop.f32.mrb[0].mxu0
      %v1546 = vadd.f32 0.0, %v1545
      %v1547 = vpop.f32.mrb[0].mxu0
      %v1548 = vpop.f32.mrb[0].mxu0
      %v1549 = vadd.f32 0.0, %v1548
      %v1550 = vpop.f32.mrb[0].mxu0
      %1551 = vmatprep.mubr.bf16.mxu0 0
      %1552 = vmatmul.mubr.bf16.gmra.mrb[0].mxu0 %v1485
      %v1553 = vpop.f32.mrb[0].mxu0
      %v1554 = vadd.f32 0.0, %v1553
      %v1555 = vpop.f32.mrb[0].mxu0
      %v1556 = vpop.f32.mrb[0].mxu0
      %v1557 = vadd.f32 0.0, %v1556
      %v1558 = vpop.f32.mrb[0].mxu0
      %1559 = vdwg.mxu0
      %v1560 = vadd.f32 %v1430, %v1522
      %v1561 = vadd.f32 %v1431, %v1525
      %v1562 = vadd.f32 %v1432, %v1530
      %v1563 = vadd.f32 %v1433, %v1533
      %v1564 = vadd.f32 %v1434, %v1538
      %v1565 = vadd.f32 %v1435, %v1541
      %v1566 = vadd.f32 %v1436, %v1546
      %v1567 = vadd.f32 %v1437, %v1549
      %v1568 = vadd.f32 %v1438, %v1554
      %v1569 = vadd.f32 %v1439, %v1557
      %v1571 = vlaneseq
      %v1572 = vshrl.u32 %v1571, 7
      %v1573 = vsub.s32 0, %v1572
      %v1574 = vrot.slane %v219, %v1573
      %v1576 = vadd.f32 %v1560, %v1574
      %v1577 = vadd.f32 %v1561, %v1574
      %v1578 = vadd.f32 %v1562, %v1574
      %v1579 = vadd.f32 %v1563, %v1574
      %v1580 = vadd.f32 %v1564, %v1574
      %v1581 = vadd.f32 %v1565, %v1574
      %v1582 = vadd.f32 %v1566, %v1574
      %v1583 = vadd.f32 %v1567, %v1574
      %v1584 = vadd.f32 %v1568, %v1574
      %v1585 = vadd.f32 %v1569, %v1574
      %v1586 = vmax.f32 %v1576, 0.0
      %v1587 = vmax.f32 %v1577, 0.0
      %v1588 = vmax.f32 %v1578, 0.0
      %v1589 = vmax.f32 %v1579, 0.0
      %v1590 = vmax.f32 %v1580, 0.0
      %v1591 = vmax.f32 %v1581, 0.0
      %v1592 = vmax.f32 %v1582, 0.0
      %v1593 = vmax.f32 %v1583, 0.0
      %v1594 = vmax.f32 %v1584, 0.0
      %v1595 = vmax.f32 %v1585, 0.0
      %v1596 = vld [vmem:[%s212] sm:$0xff]
      %v1597 = vld [vmem:[%s212 + $0x8] sm:$0xff]
      %v1598 = vld [vmem:[%s212 + $0x10] sm:$0xff]
      %v1599 = vld [vmem:[%s212 + $0x18] sm:$0xff]
      %v1600 = vld [vmem:[%s212 + $0x20] sm:$0xff]
      %v1601 = vld [vmem:[%s212 + $0x28] sm:$0xff]
      %v1602 = vld [vmem:[%s212 + $0x30] sm:$0xff]
      %v1603 = vld [vmem:[%s212 + $0x38] sm:$0xff]
      %v1604 = vld [vmem:[%s212 + $0x40] sm:$0xff]
      %v1605 = vld [vmem:[%s212 + $0x48] sm:$0xff]
      %1607 = vset.pattern.permute.xlu0 0
      %1608 = vperm.xlu0 %1607, %v1596
      %v1609 = vpop.permute.xlu0 %1608
      %1612 = vset.pattern.permute.xlu0 0
      %1613 = vperm.xlu0 %1612, %v1597
      %v1614 = vpop.permute.xlu0 %1613
      %1617 = vset.pattern.permute.xlu0 0
      %1618 = vperm.xlu0 %1617, %v1598
      %v1619 = vpop.permute.xlu0 %1618
      %1622 = vset.pattern.permute.xlu0 0
      %1623 = vperm.xlu0 %1622, %v1599
      %v1624 = vpop.permute.xlu0 %1623
      %1627 = vset.pattern.permute.xlu0 0
      %1628 = vperm.xlu0 %1627, %v1600
      %v1629 = vpop.permute.xlu0 %1628
      %1632 = vset.pattern.permute.xlu0 0
      %1633 = vperm.xlu0 %1632, %v1601
      %v1634 = vpop.permute.xlu0 %1633
      %1637 = vset.pattern.permute.xlu0 0
      %1638 = vperm.xlu0 %1637, %v1602
      %v1639 = vpop.permute.xlu0 %1638
      %1642 = vset.pattern.permute.xlu0 0
      %1643 = vperm.xlu0 %1642, %v1603
      %v1644 = vpop.permute.xlu0 %1643
      %1647 = vset.pattern.permute.xlu0 0
      %1648 = vperm.xlu0 %1647, %v1604
      %v1649 = vpop.permute.xlu0 %1648
      %1652 = vset.pattern.permute.xlu0 0
      %1653 = vperm.xlu0 %1652, %v1605
      %v1654 = vpop.permute.xlu0 %1653
      %v1656 = vmul.f32 %v1586, %v1609
      %v1657 = vmul.f32 %v1587, %v1614
      %v1658 = vmul.f32 %v1588, %v1619
      %v1659 = vmul.f32 %v1589, %v1624
      %v1660 = vmul.f32 %v1590, %v1629
      %v1661 = vmul.f32 %v1591, %v1634
      %v1662 = vmul.f32 %v1592, %v1639
      %v1663 = vmul.f32 %v1593, %v1644
      %v1664 = vmul.f32 %v1594, %v1649
      %v1665 = vmul.f32 %v1595, %v1654
      %1666 = vst.msk [vmem:[%s217] sm:$0xff] %vm324, %v1656
      %1667 = vst.msk [vmem:[%s217 + $0x8] sm:$0xff] %vm324, %v1657
      %1668 = vst.msk [vmem:[%s217 + $0x10] sm:$0xff] %vm324, %v1658
      %1669 = vst.msk [vmem:[%s217 + $0x18] sm:$0xff] %vm324, %v1659
      %1670 = vst.msk [vmem:[%s217 + $0x20] sm:$0xff] %vm324, %v1660
      %1671 = vst.msk [vmem:[%s217 + $0x28] sm:$0xff] %vm324, %v1661
      %1672 = vst.msk [vmem:[%s217 + $0x30] sm:$0xff] %vm324, %v1662
      %1673 = vst.msk [vmem:[%s217 + $0x38] sm:$0xff] %vm324, %v1663
      %1674 = vst.msk [vmem:[%s217 + $0x40] sm:$0xff] %vm324, %v1664
      %1675 = vst.msk [vmem:[%s217 + $0x48] sm:$0xff] %vm324, %v1665
      %p1676 = scmp.lt.s32.totalorder %s15, 1
      %s1677 = scalar_select %p1676, %s15, 1
      %s1678 = smul.addr %s1677, 10
      %s1679 = smul.addr %s1678, 8
      %s1680 = scalar_lea.vmem %s4, %s1679
      // Predicated region
      $region37: #{tpu_custom_call.1} parent=35 // pred_check
        %p1681 = pneg %p127
      $region38: #{tpu_custom_call.1} parent=35 // pred_check_branch
        %1683 = sbr.rel (%p1681) target = $region40
      $region39: #{tpu_custom_call.1} parent=35 // pred_region
        _
      $region40: #{tpu_custom_call.1} parent=35 // pred_fallthru
        _
    $region36: #{tpu_custom_call.1} parent=5 // pred_fallthru
      _
    %p1684 = scmp.le.s32.totalorder 2, %s10
    // Predicated region
    $region41: #{tpu_custom_call.1} parent=5 // pred_check
      %p1685 = pneg %p1684
    $region42: #{tpu_custom_call.1} parent=5 // pred_check_branch
      %1687 = sbr.rel (%p1685) target = $region44
    $region43: #{tpu_custom_call.1} parent=5 // pred_region
      %s1688 = ssub.s32 %s10, 2
      // Predicated region
      $region45: #{tpu_custom_call.1} parent=43 // pred_check
        %p1689 = pneg %p133
      $region46: #{tpu_custom_call.1} parent=43 // pred_check_branch
        %1691 = sbr.rel (%p1689) target = $region48
      $region47: #{tpu_custom_call.1} parent=43 // pred_region
        %p1692 = scmp.lt.s32.totalorder %s16, 1
        %s1693 = scalar_select %p1692, %s16, 1
        %s1694 = smul.addr %s1693, 10
        %s1695 = smul.addr %s1694, 8
        %s1696 = scalar_lea.vmem %s4, %s1695
      $region48: #{tpu_custom_call.1} parent=43 // pred_fallthru
        _
    $region44: #{tpu_custom_call.1} parent=5 // pred_fallthru
      _
  $region6: #{tpu_custom_call.1} parent=0 // loop_footer
    %s14 = sadd.s32 1, %s10
  $region7: #{tpu_custom_call.1} parent=0 // loop_footer_branch
    %9 = sbr.rel target = $region3
  $region8: #{tpu_custom_call.1} parent=0 // loop_exit
    _

</llo_original>
